<compile_context>
chip_gen: v6e
topology: v6e:2x2x1
jax: 0.10.0
libtpu: 0.0.40
codegen_flags: <defaults>
</compile_context>

<pallas_src>
import jax
import jax.numpy as jnp
from jax import lax
from jax.experimental import pallas as pl
from jax.experimental.pallas import tpu as pltpu

GINE_EPS = 0.0      # GINEConv eps (train_eps=False -> fixed constant)
BN_EPS = 1e-5       # BatchNorm1d eps
LANE = 128          # TPU vreg lane width


def _round_up(a, b):
    return (a + b - 1) // b * b


def _gine_kernel(blk_lo_ref, blk_hi_ref,               # scalar prefetch (SMEM)
                 x_ref, xsrc_ref, ea_ref, dst_ref,     # node tile / edge block
                 wl_ref, bl_ref, w1_ref, b1_ref, w2_ref, b2_ref,   # params
                 y_ref,                                # output node tile
                 agg_ref):                             # VMEM accumulator (f32)
    i = pl.program_id(0)            # node tile
    k = pl.program_id(1)            # edge block (reduction axis)
    tn = agg_ref.shape[0]
    edge_dt = xsrc_ref.dtype        # bf16 on the fast path, f32 for verify

    @pl.when(k == 0)
    def _init():
        agg_ref[...] = jnp.zeros_like(agg_ref)

    lo = blk_lo_ref[i]
    hi = blk_hi_ref[i]

    # Only edge blocks that can contain edges destined to this node tile
    # (edges are sorted by dst) do any work; others are pl.when-skipped.
    @pl.when(jnp.logical_and(k >= lo, k < hi))
    def _accumulate():
        # m_e = relu( x[src_e] + edge_attr_e @ W_lin + b_lin )      (TE, Fin)
        ea = jnp.dot(ea_ref[...], wl_ref[...],
                     preferred_element_type=jnp.float32)
        msg = jnp.maximum(xsrc_ref[...].astype(jnp.float32) + ea + bl_ref[...],
                          0.0)
        msg = msg.astype(edge_dt)
        # Lane-dense dst row; one-hot built as (TN, TE) so the local scatter
        # is a plain (TN,TE)@(TE,Fin) matmul (no transposed contraction).
        node_ids = i * tn + lax.broadcasted_iota(jnp.int32, (tn, 1), 0)
        dst_row = dst_ref[0]                                  # (1, TE)
        onehot = (node_ids == dst_row).astype(edge_dt)        # (TN, TE)
        agg_ref[...] += jnp.dot(onehot, msg,
                                preferred_element_type=jnp.float32)

    @pl.when(k == pl.num_programs(1) - 1)
    def _finalize():
        h = (1.0 + GINE_EPS) * x_ref[...] + agg_ref[...]
        # Linear1 with BatchNorm (inference) pre-folded, then ReLU, Linear2.
        z = jnp.dot(h, w1_ref[...], preferred_element_type=jnp.float32) \
            + b1_ref[...]
        z = jnp.maximum(z, 0.0)
        y = jnp.dot(z, w2_ref[...], preferred_element_type=jnp.float32) \
            + b2_ref[...]
        y_ref[...] = y.astype(y_ref.dtype)


def gine_forward(x, edge_index, edge_attr, params, *,
                 tile_n=128, tile_e=256, stream_dtype=jnp.bfloat16):
    """GINE forward. x: (N, in_size) f32, edge_index: (2, E) i32,
    edge_attr: (E, edge_dim) f32."""
    n, fi = x.shape
    e, de = edge_attr.shape
    fo = params["w2"].shape[1]

    # ---- fold inference BatchNorm into Linear1 (wrapper-side, exact) -------
    s = params["gamma"] * lax.rsqrt(params["var"] + BN_EPS)         # (1, fo)
    w1f = params["w1"] * s                                          # (fi, fo)
    b1f = (params["b1"] - params["mu"]) * s + params["beta"]        # (1, fo)

    # ---- tiling: only the output feature dim is padded to 128 lanes --------
    fo_p = _round_up(fo, LANE)
    n_tiles = pl.cdiv(n, tile_n)
    if n_tiles > 1 and n_tiles % 2:
        n_tiles += 1            # even node-tile count: v7x's 2 TCs both work
    n_p = n_tiles * tile_n
    e_blocks = pl.cdiv(e, tile_e)
    e_p = e_blocks * tile_e

    # ---- sort edges by destination (index glue, XLA) ------------------------
    src = edge_index[0].astype(jnp.int32)
    dst = edge_index[1].astype(jnp.int32)
    order = jnp.argsort(dst)
    src_s = src[order]
    dst_s = dst[order]
    ea_s = edge_attr[order]

    pad_e = e_p - e
    src_s = jnp.concatenate([src_s, jnp.zeros((pad_e,), jnp.int32)])
    # dummy edges get dst = n_p, which matches no node id -> zero one-hot
    dst_s = jnp.concatenate([dst_s, jnp.full((pad_e,), n_p, jnp.int32)])
    ea_p = jnp.pad(ea_s, ((0, pad_e), (0, 0))).astype(stream_dtype)

    x_p = jnp.pad(x, ((0, n_p - n), (0, 0)))
    xsrc = x_p[src_s].astype(stream_dtype)             # (e_p, fi) XLA gather
    dst_b = dst_s.reshape(e_blocks, 1, tile_e)          # lane-dense dst blocks

    # ---- per-node-tile edge-block ranges over the sorted edge list ----------
    tile_starts = jnp.arange(n_tiles, dtype=jnp.int32) * tile_n
    e_lo = jnp.searchsorted(dst_s, tile_starts, side="left")
    e_hi = jnp.searchsorted(dst_s, tile_starts + tile_n, side="left")
    blk_lo = jnp.minimum(e_lo // tile_e, e_blocks - 1).astype(jnp.int32)
    blk_hi = jnp.minimum((e_hi + tile_e - 1) // tile_e, e_blocks).astype(jnp.int32)

    # ---- parameters (only output-feature dims zero-padded; exact) -----------
    wl_c = params["wl"].astype(stream_dtype)                         # (de, fi)
    bl_c = params["bl"]                                              # (1, fi)
    w1_p = jnp.pad(w1f, ((0, 0), (0, fo_p - fo)))
    b1_p = jnp.pad(b1f, ((0, 0), (0, fo_p - fo)))
    w2_p = jnp.pad(params["w2"], ((0, fo_p - fo), (0, fo_p - fo)))
    b2_p = jnp.pad(params["b2"], ((0, 0), (0, fo_p - fo)))

    # ---- BlockSpecs ----------------------------------------------------------
    def node_map(i, k, lo, hi):
        return (i, 0)

    def _clamp_block(i, k, lo, hi):
        l = lo[i]
        h = jnp.maximum(hi[i] - 1, l)
        return jnp.minimum(jnp.maximum(k, l), h)

    def edge_map(i, k, lo, hi):
        # Out-of-range grid steps re-select an in-range block (mostly already
        # resident), so skipped steps do little or no extra DMA.
        return (_clamp_block(i, k, lo, hi), 0)

    def edge_map3(i, k, lo, hi):
        return (_clamp_block(i, k, lo, hi), 0, 0)

    def const_map(i, k, lo, hi):
        return (0, 0)

    # ---- advisory cost estimate ---------------------------------------------
    itemsize = jnp.dtype(stream_dtype).itemsize
    flops = (2 * e_p * de * fi            # edge linear
             + 2 * e_p * tile_n * fi      # one-hot scatter contraction
             + 2 * n_p * fi * fo_p        # Linear1 (BN folded)
             + 2 * n_p * fo_p * fo_p)     # Linear2
    bytes_accessed = (e_p * fi * itemsize + e_p * de * itemsize + e_p * 4
                      + n_p * fi * 4 + n_p * fo_p * 4
                      + de * fi * itemsize
                      + fi * fo_p * 4 + fo_p * fo_p * 4 + 2 * fo_p * 4)
    cost = pl.CostEstimate(flops=flops, transcendentals=0,
                           bytes_accessed=bytes_accessed)

    out = pl.pallas_call(
        _gine_kernel,
        out_shape=jax.ShapeDtypeStruct((n_p, fo_p), jnp.float32),
        grid_spec=pltpu.PrefetchScalarGridSpec(
            num_scalar_prefetch=2,
            grid=(n_tiles, e_blocks),
            in_specs=[
                pl.BlockSpec((tile_n, fi), node_map),        # x        (node tile)
                pl.BlockSpec((tile_e, fi), edge_map),        # x[src]   (edge block)
                pl.BlockSpec((tile_e, de), edge_map),        # edge_attr(edge block)
                pl.BlockSpec((1, 1, tile_e), edge_map3),     # dst      (edge block)
                pl.BlockSpec((de, fi), const_map),           # W_lin
                pl.BlockSpec((1, fi), const_map),            # b_lin
                pl.BlockSpec((fi, fo_p), const_map),         # W1 (BN folded)
                pl.BlockSpec((1, fo_p), const_map),          # b1 (BN folded)
                pl.BlockSpec((fo_p, fo_p), const_map),       # W2
                pl.BlockSpec((1, fo_p), const_map),          # b2
            ],
            out_specs=pl.BlockSpec((tile_n, fo_p), node_map),
            scratch_shapes=[pltpu.VMEM((tile_n, fi), jnp.float32)],
        ),
        compiler_params=pltpu.CompilerParams(
            dimension_semantics=("parallel", "arbitrary"),
            vmem_limit_bytes=48 * 1024 * 1024,
        ),
        cost_estimate=cost,
    )(blk_lo, blk_hi,
      x_p, xsrc, ea_p, dst_b,
      wl_c, bl_c, w1_p, b1_p, w2_p, b2_p)

    return out[:n, :fo]


def init_params(key, in_size, out_size, edge_dim):
    """Deterministic parameter init (PyTorch-style uniform fan-in scaling).
    Weights stored pre-transposed: (in, out) so the kernel does x @ W."""
    ks = jax.random.split(key, 6)

    def lin(kw, kb, fan_in, fan_out):
        bound = 1.0 / jnp.sqrt(fan_in)
        w = jax.random.uniform(kw, (fan_in, fan_out), jnp.float32, -bound, bound)
        b = jax.random.uniform(kb, (1, fan_out), jnp.float32, -bound, bound)
        return w, b

    wl, bl = lin(ks[0], ks[1], edge_dim, in_size)      # GINEConv.lin
    w1, b1 = lin(ks[2], ks[3], in_size, out_size)      # MLP Linear1
    w2, b2 = lin(ks[4], ks[5], out_size, out_size)     # MLP Linear2
    return {
        "wl": wl, "bl": bl,
        "w1": w1, "b1": b1,
        "gamma": jnp.ones((1, out_size), jnp.float32),
        "beta": jnp.zeros((1, out_size), jnp.float32),
        "mu": jnp.zeros((1, out_size), jnp.float32),
        "var": jnp.ones((1, out_size), jnp.float32),
        "w2": w2, "b2": b2,
    }


def gine_reference(x, edge_index, edge_attr, params):
    """Plain-JAX reference (unfused BN) for verification."""
    src, dst = edge_index[0], edge_index[1]
    ea = edge_attr @ params["wl"] + params["bl"]
    msg = jnp.maximum(x[src] + ea, 0.0)
    agg = jax.ops.segment_sum(msg, dst, num_segments=x.shape[0])
    h = (1.0 + GINE_EPS) * x + agg
    z = h @ params["w1"] + params["b1"]
    z = (z - params["mu"]) * lax.rsqrt(params["var"] + BN_EPS) * params["gamma"] \
        + params["beta"]
    z = jnp.maximum(z, 0.0)
    return z @ params["w2"] + params["b2"]


if __name__ == "__main__":
    in_size, out_size, edge_dim = 16, 32, 8
    n_nodes, n_edges = 64, 256

    key = jax.random.PRNGKey(0)
    k_x, k_ea, k_src, k_dst, k_p = jax.random.split(key, 5)

    x = jax.random.normal(k_x, (n_nodes, in_size), jnp.float32)
    edge_attr = jax.random.normal(k_ea, (n_edges, edge_dim), jnp.float32)
    src = jax.random.randint(k_src, (n_edges,), 0, n_nodes, jnp.int32)
    dst = jax.random.randint(k_dst, (n_edges,), 0, n_nodes, jnp.int32)
    edge_index = jnp.stack([src, dst], axis=0)

    params = init_params(k_p, in_size, out_size, edge_dim)
    y_ref = gine_reference(x, edge_index, edge_attr, params)

    # f32 streams at default (large) tiles: exact-path verification, grid (1,1)
    y32 = gine_forward(x, edge_index, edge_attr, params,
                       stream_dtype=jnp.float32)
    y32 = jax.block_until_ready(y32)
    assert y32.shape == (n_nodes, out_size)
    assert jnp.allclose(y32, y_ref, atol=2e-4, rtol=2e-4), "f32 mismatch vs ref"

    # bf16 fast path with small tiles: exercises multi-block grid + skip logic
    y16 = gine_forward(x, edge_index, edge_attr, params,
                       tile_n=16, tile_e=64, stream_dtype=jnp.bfloat16)
    y16 = jax.block_until_ready(y16)
    assert y16.shape == (n_nodes, out_size)
    assert jnp.allclose(y16, y_ref, atol=0.25, rtol=0.1), "bf16 mismatch vs ref"

    print("KERNEL_OK")
</pallas_src>

<mosaic_0001>
module attributes {stable_mosaic.version = 11 : i64} {
  func.func @_gine_kernel(%arg0: i32, %arg1: i32, %arg2: memref<1xi32, #tpu.memory_space<smem>>, %arg3: memref<1xi32, #tpu.memory_space<smem>>, %arg4: memref<128x16xf32, #tpu.memory_space<vmem>>, %arg5: memref<256x16xf32, #tpu.memory_space<vmem>>, %arg6: memref<256x8xf32, #tpu.memory_space<vmem>>, %arg7: memref<1x1x256xi32, #tpu.memory_space<vmem>>, %arg8: memref<8x16xf32, #tpu.memory_space<vmem>>, %arg9: memref<1x16xf32, #tpu.memory_space<vmem>>, %arg10: memref<16x128xf32, #tpu.memory_space<vmem>>, %arg11: memref<1x128xf32, #tpu.memory_space<vmem>>, %arg12: memref<128x128xf32, #tpu.memory_space<vmem>>, %arg13: memref<1x128xf32, #tpu.memory_space<vmem>>, %arg14: memref<128x128xf32, #tpu.memory_space<vmem>>, %arg15: memref<128x16xf32, #tpu.memory_space<vmem>>) attributes {dimension_semantics = [#tpu.dimension_semantics<parallel>, #tpu.dimension_semantics<arbitrary>], iteration_bounds = array<i64: 1, 1>, scalar_prefetch = 2 : i64, scratch_operands = 1 : i64, tpu.core_type = #tpu.core_type<tc>, window_params = [{transform_indices = @transform_0, window_bounds = array<i64: 128, 16>}, {transform_indices = @transform_1, window_bounds = array<i64: 256, 16>}, {transform_indices = @transform_2, window_bounds = array<i64: 256, 8>}, {transform_indices = @transform_3, window_bounds = array<i64: 1, 1, 256>}, {pipeline_mode = #tpu.pipeline_mode<synchronous>, transform_indices = @transform_4, window_bounds = array<i64: 8, 16>}, {pipeline_mode = #tpu.pipeline_mode<synchronous>, transform_indices = @transform_5, window_bounds = array<i64: 1, 16>}, {pipeline_mode = #tpu.pipeline_mode<synchronous>, transform_indices = @transform_6, window_bounds = array<i64: 16, 128>}, {pipeline_mode = #tpu.pipeline_mode<synchronous>, transform_indices = @transform_7, window_bounds = array<i64: 1, 128>}, {pipeline_mode = #tpu.pipeline_mode<synchronous>, transform_indices = @transform_8, window_bounds = array<i64: 128, 128>}, {pipeline_mode = #tpu.pipeline_mode<synchronous>, transform_indices = @transform_9, window_bounds = array<i64: 1, 128>}, {transform_indices = @transform_10, window_bounds = array<i64: 128, 128>}]} {
    %c0_i32 = arith.constant 0 : i32
    %0 = arith.cmpi eq, %arg1, %c0_i32 : i32
    %1 = arith.extui %0 : i1 to i32
    %c0_i32_0 = arith.constant 0 : i32
    %2 = arith.cmpi ne, %1, %c0_i32_0 : i32
    scf.if %2 {
      %cst = arith.constant 0.000000e+00 : f32
      %15 = vector.broadcast %cst : f32 to vector<128x16xf32>
      %c0 = arith.constant 0 : index
      %c0_4 = arith.constant 0 : index
      %16 = vector.load %arg15[%c0, %c0_4] : memref<128x16xf32, #tpu.memory_space<vmem>>, vector<128x16xf32>
      tpu.vector_store %arg15[%c0, %c0_4], %15 {strides = array<i32>} : memref<128x16xf32, #tpu.memory_space<vmem>>, vector<128x16xf32>,
    } else {
    }
    %3 = arith.index_cast %arg0 : i32 to index
    %4 = memref.load %arg2[%3] : memref<1xi32, #tpu.memory_space<smem>>
    %5 = arith.index_cast %arg0 : i32 to index
    %6 = memref.load %arg3[%5] : memref<1xi32, #tpu.memory_space<smem>>
    %7 = arith.cmpi sge, %arg1, %4 : i32
    %8 = arith.cmpi slt, %arg1, %6 : i32
    %9 = arith.andi %7, %8 : i1
    %10 = arith.extui %9 : i1 to i32
    %c0_i32_1 = arith.constant 0 : i32
    %11 = arith.cmpi ne, %10, %c0_i32_1 : i32
    scf.if %11 {
      %c0 = arith.constant 0 : index
      %c0_4 = arith.constant 0 : index
      %15 = vector.load %arg6[%c0, %c0_4] : memref<256x8xf32, #tpu.memory_space<vmem>>, vector<256x8xf32>
      %c0_5 = arith.constant 0 : index
      %c0_6 = arith.constant 0 : index
      %16 = vector.load %arg8[%c0_5, %c0_6] : memref<8x16xf32, #tpu.memory_space<vmem>>, vector<8x16xf32>
      %cst = arith.constant dense<0.000000e+00> : vector<256x16xf32>
      %17 = tpu.matmul %15, %16, %cst {dimension_numbers = #tpu.dot_dimension_numbers<[1], [0], [0], [1], [0, 0, 1, 1], [], []>} : vector<256x8xf32>, vector<8x16xf32>, vector<256x16xf32> -> vector<256x16xf32>
      %c0_7 = arith.constant 0 : index
      %c0_8 = arith.constant 0 : index
      %18 = vector.load %arg5[%c0_7, %c0_8] : memref<256x16xf32, #tpu.memory_space<vmem>>, vector<256x16xf32>
      %19 = arith.addf %18, %17 : vector<256x16xf32>
      %c0_9 = arith.constant 0 : index
      %c0_10 = arith.constant 0 : index
      %20 = vector.load %arg9[%c0_9, %c0_10] : memref<1x16xf32, #tpu.memory_space<vmem>>, vector<1x16xf32>
      %21 = vector.broadcast %20 : vector<1x16xf32> to vector<256x16xf32>
      %22 = arith.addf %19, %21 : vector<256x16xf32>
      %cst_11 = arith.constant 0.000000e+00 : f32
      %23 = vector.broadcast %cst_11 : f32 to vector<256x16xf32>
      %24 = arith.maximumf %22, %23 : vector<256x16xf32>
      %c128_i32 = arith.constant 128 : i32
      %25 = arith.muli %arg0, %c128_i32 : i32
      %26 = tpu.iota {dimensions = array<i32: 0>} : vector<128x1xi32>
      %27 = vector.broadcast %25 : i32 to vector<128x1xi32>
      %28 = arith.addi %27, %26 : vector<128x1xi32>
      %c0_12 = arith.constant 0 : index
      %c0_13 = arith.constant 0 : index
      %c0_14 = arith.constant 0 : index
      %29 = vector.load %arg7[%c0_12, %c0_13, %c0_14] : memref<1x1x256xi32, #tpu.memory_space<vmem>>, vector<1x1x256xi32>
      %30 = vector.shape_cast %29 : vector<1x1x256xi32> to vector<1x256xi32>
      %31 = vector.broadcast %28 : vector<128x1xi32> to vector<128x256xi32>
      %32 = vector.broadcast %30 : vector<1x256xi32> to vector<128x256xi32>
      %33 = arith.cmpi eq, %31, %32 : vector<128x256xi32>
      %34 = arith.extui %33 : vector<128x256xi1> to vector<128x256xi32>
      %35 = arith.sitofp %34 : vector<128x256xi32> to vector<128x256xf32>
      %c0_15 = arith.constant 0 : index
      %c0_16 = arith.constant 0 : index
      %36 = vector.load %arg15[%c0_15, %c0_16] : memref<128x16xf32, #tpu.memory_space<vmem>>, vector<128x16xf32>
      %cst_17 = arith.constant dense<0.000000e+00> : vector<128x16xf32>
      %37 = tpu.matmul %35, %24, %cst_17 {dimension_numbers = #tpu.dot_dimension_numbers<[1], [0], [0], [1], [0, 0, 1, 1], [], []>} : vector<128x256xf32>, vector<256x16xf32>, vector<128x16xf32> -> vector<128x16xf32>
      %38 = arith.addf %36, %37 : vector<128x16xf32>
      %c0_18 = arith.constant 0 : index
      %c0_19 = arith.constant 0 : index
      %39 = vector.load %arg15[%c0_18, %c0_19] : memref<128x16xf32, #tpu.memory_space<vmem>>, vector<128x16xf32>
      tpu.vector_store %arg15[%c0_18, %c0_19], %38 {strides = array<i32>} : memref<128x16xf32, #tpu.memory_space<vmem>>, vector<128x16xf32>,
    } else {
    }
    %c0_i32_2 = arith.constant 0 : i32
    %12 = arith.cmpi eq, %arg1, %c0_i32_2 : i32
    %13 = arith.extui %12 : i1 to i32
    %c0_i32_3 = arith.constant 0 : i32
    %14 = arith.cmpi ne, %13, %c0_i32_3 : i32
    scf.if %14 {
      %c0 = arith.constant 0 : index
      %c0_4 = arith.constant 0 : index
      %15 = vector.load %arg4[%c0, %c0_4] : memref<128x16xf32, #tpu.memory_space<vmem>>, vector<128x16xf32>
      %cst = arith.constant 1.000000e+00 : f32
      %16 = vector.broadcast %cst : f32 to vector<128x16xf32>
      %17 = arith.mulf %16, %15 : vector<128x16xf32>
      %c0_5 = arith.constant 0 : index
      %c0_6 = arith.constant 0 : index
      %18 = vector.load %arg15[%c0_5, %c0_6] : memref<128x16xf32, #tpu.memory_space<vmem>>, vector<128x16xf32>
      %19 = arith.addf %17, %18 : vector<128x16xf32>
      %c0_7 = arith.constant 0 : index
      %c0_8 = arith.constant 0 : index
      %20 = vector.load %arg10[%c0_7, %c0_8] : memref<16x128xf32, #tpu.memory_space<vmem>>, vector<16x128xf32>
      %cst_9 = arith.constant dense<0.000000e+00> : vector<128x128xf32>
      %21 = tpu.matmul %19, %20, %cst_9 {dimension_numbers = #tpu.dot_dimension_numbers<[1], [0], [0], [1], [0, 0, 1, 1], [], []>} : vector<128x16xf32>, vector<16x128xf32>, vector<128x128xf32> -> vector<128x128xf32>
      %c0_10 = arith.constant 0 : index
      %c0_11 = arith.constant 0 : index
      %22 = vector.load %arg11[%c0_10, %c0_11] : memref<1x128xf32, #tpu.memory_space<vmem>>, vector<1x128xf32>
      %23 = vector.broadcast %22 : vector<1x128xf32> to vector<128x128xf32>
      %24 = arith.addf %21, %23 : vector<128x128xf32>
      %cst_12 = arith.constant 0.000000e+00 : f32
      %25 = vector.broadcast %cst_12 : f32 to vector<128x128xf32>
      %26 = arith.maximumf %24, %25 : vector<128x128xf32>
      %c0_13 = arith.constant 0 : index
      %c0_14 = arith.constant 0 : index
      %27 = vector.load %arg12[%c0_13, %c0_14] : memref<128x128xf32, #tpu.memory_space<vmem>>, vector<128x128xf32>
      %cst_15 = arith.constant dense<0.000000e+00> : vector<128x128xf32>
      %28 = tpu.matmul %26, %27, %cst_15 {dimension_numbers = #tpu.dot_dimension_numbers<[1], [0], [0], [1], [0, 0, 1, 1], [], []>} : vector<128x128xf32>, vector<128x128xf32>, vector<128x128xf32> -> vector<128x128xf32>
      %c0_16 = arith.constant 0 : index
      %c0_17 = arith.constant 0 : index
      %29 = vector.load %arg13[%c0_16, %c0_17] : memref<1x128xf32, #tpu.memory_space<vmem>>, vector<1x128xf32>
      %30 = vector.broadcast %29 : vector<1x128xf32> to vector<128x128xf32>
      %31 = arith.addf %28, %30 : vector<128x128xf32>
      %c0_18 = arith.constant 0 : index
      %c0_19 = arith.constant 0 : index
      %32 = vector.load %arg14[%c0_18, %c0_19] : memref<128x128xf32, #tpu.memory_space<vmem>>, vector<128x128xf32>
      tpu.vector_store %arg14[%c0_18, %c0_19], %31 {strides = array<i32>} : memref<128x128xf32, #tpu.memory_space<vmem>>, vector<128x128xf32>,
    } else {
    }
    return
  }
  func.func @transform_0(%arg0: i32, %arg1: i32, %arg2: memref<1xi32, #tpu.memory_space<smem>>, %arg3: memref<1xi32, #tpu.memory_space<smem>>) -> (i32, i32) {
    %c0_i32 = arith.constant 0 : i32
    %c0_i32_0 = arith.constant 0 : i32
    return %arg0, %c0_i32 : i32, i32
  }
  func.func @transform_1(%arg0: i32, %arg1: i32, %arg2: memref<1xi32, #tpu.memory_space<smem>>, %arg3: memref<1xi32, #tpu.memory_space<smem>>) -> (i32, i32) {
    %0 = arith.index_cast %arg0 : i32 to index
    %1 = memref.load %arg2[%0] : memref<1xi32, #tpu.memory_space<smem>>
    %2 = arith.index_cast %arg0 : i32 to index
    %3 = memref.load %arg3[%2] : memref<1xi32, #tpu.memory_space<smem>>
    %c1_i32 = arith.constant 1 : i32
    %4 = arith.subi %3, %c1_i32 : i32
    %5 = arith.maxsi %4, %1 : i32
    %6 = arith.maxsi %arg1, %1 : i32
    %7 = arith.minsi %6, %5 : i32
    %c0_i32 = arith.constant 0 : i32
    %c0_i32_0 = arith.constant 0 : i32
    return %7, %c0_i32 : i32, i32
  }
  func.func @transform_2(%arg0: i32, %arg1: i32, %arg2: memref<1xi32, #tpu.memory_space<smem>>, %arg3: memref<1xi32, #tpu.memory_space<smem>>) -> (i32, i32) {
    %0 = arith.index_cast %arg0 : i32 to index
    %1 = memref.load %arg2[%0] : memref<1xi32, #tpu.memory_space<smem>>
    %2 = arith.index_cast %arg0 : i32 to index
    %3 = memref.load %arg3[%2] : memref<1xi32, #tpu.memory_space<smem>>
    %c1_i32 = arith.constant 1 : i32
    %4 = arith.subi %3, %c1_i32 : i32
    %5 = arith.maxsi %4, %1 : i32
    %6 = arith.maxsi %arg1, %1 : i32
    %7 = arith.minsi %6, %5 : i32
    %c0_i32 = arith.constant 0 : i32
    %c0_i32_0 = arith.constant 0 : i32
    return %7, %c0_i32 : i32, i32
  }
  func.func @transform_3(%arg0: i32, %arg1: i32, %arg2: memref<1xi32, #tpu.memory_space<smem>>, %arg3: memref<1xi32, #tpu.memory_space<smem>>) -> (i32, i32, i32) {
    %0 = arith.index_cast %arg0 : i32 to index
    %1 = memref.load %arg2[%0] : memref<1xi32, #tpu.memory_space<smem>>
    %2 = arith.index_cast %arg0 : i32 to index
    %3 = memref.load %arg3[%2] : memref<1xi32, #tpu.memory_space<smem>>
    %c1_i32 = arith.constant 1 : i32
    %4 = arith.subi %3, %c1_i32 : i32
    %5 = arith.maxsi %4, %1 : i32
    %6 = arith.maxsi %arg1, %1 : i32
    %7 = arith.minsi %6, %5 : i32
    %c0_i32 = arith.constant 0 : i32
    %c0_i32_0 = arith.constant 0 : i32
    %c0_i32_1 = arith.constant 0 : i32
    return %7, %c0_i32, %c0_i32_0 : i32, i32, i32
  }
  func.func @transform_4(%arg0: i32, %arg1: i32, %arg2: memref<1xi32, #tpu.memory_space<smem>>, %arg3: memref<1xi32, #tpu.memory_space<smem>>) -> (i32, i32) {
    %c0_i32 = arith.constant 0 : i32
    %c0_i32_0 = arith.constant 0 : i32
    %c0_i32_1 = arith.constant 0 : i32
    return %c0_i32, %c0_i32_0 : i32, i32
  }
  func.func @transform_5(%arg0: i32, %arg1: i32, %arg2: memref<1xi32, #tpu.memory_space<smem>>, %arg3: memref<1xi32, #tpu.memory_space<smem>>) -> (i32, i32) {
    %c0_i32 = arith.constant 0 : i32
    %c0_i32_0 = arith.constant 0 : i32
    %c0_i32_1 = arith.constant 0 : i32
    return %c0_i32, %c0_i32_0 : i32, i32
  }
  func.func @transform_6(%arg0: i32, %arg1: i32, %arg2: memref<1xi32, #tpu.memory_space<smem>>, %arg3: memref<1xi32, #tpu.memory_space<smem>>) -> (i32, i32) {
    %c0_i32 = arith.constant 0 : i32
    %c0_i32_0 = arith.constant 0 : i32
    %c0_i32_1 = arith.constant 0 : i32
    return %c0_i32, %c0_i32_0 : i32, i32
  }
  func.func @transform_7(%arg0: i32, %arg1: i32, %arg2: memref<1xi32, #tpu.memory_space<smem>>, %arg3: memref<1xi32, #tpu.memory_space<smem>>) -> (i32, i32) {
    %c0_i32 = arith.constant 0 : i32
    %c0_i32_0 = arith.constant 0 : i32
    %c0_i32_1 = arith.constant 0 : i32
    return %c0_i32, %c0_i32_0 : i32, i32
  }
  func.func @transform_8(%arg0: i32, %arg1: i32, %arg2: memref<1xi32, #tpu.memory_space<smem>>, %arg3: memref<1xi32, #tpu.memory_space<smem>>) -> (i32, i32) {
    %c0_i32 = arith.constant 0 : i32
    %c0_i32_0 = arith.constant 0 : i32
    %c0_i32_1 = arith.constant 0 : i32
    return %c0_i32, %c0_i32_0 : i32, i32
  }
  func.func @transform_9(%arg0: i32, %arg1: i32, %arg2: memref<1xi32, #tpu.memory_space<smem>>, %arg3: memref<1xi32, #tpu.memory_space<smem>>) -> (i32, i32) {
    %c0_i32 = arith.constant 0 : i32
    %c0_i32_0 = arith.constant 0 : i32
    %c0_i32_1 = arith.constant 0 : i32
    return %c0_i32, %c0_i32_0 : i32, i32
  }
  func.func @transform_10(%arg0: i32, %arg1: i32, %arg2: memref<1xi32, #tpu.memory_space<smem>>, %arg3: memref<1xi32, #tpu.memory_space<smem>>) -> (i32, i32) {
    %c0_i32 = arith.constant 0 : i32
    %c0_i32_0 = arith.constant 0 : i32
    return %arg0, %c0_i32 : i32, i32
  }
}

</mosaic_0001>

<llo_original>
// kernel: tpu_custom_call.1
$region0: #{tpu_custom_call.1}
  #allocation0 [shape = 'u32[]', space=smem, size = 0x4, offset = 0x4, fixed_abs, tag = 'smem constant byte address 0x4 - core index']
  #allocation1 [shape = 'u32[144,128]{1,0:T(1,128)}', space=vmem, size = 0x12000, scoped, tag = 'internal scratch']
  #allocation2 [shape = 'f32[128,16]{1,0:T(8,128)}', space=vmem, size = 0x10000, scoped, tag = 'scratch operand']
  #allocation3 [shape = 's32[1]{0}', space=sflag, size = 0x4, scoped, tag = 'scoped memory for tpu_custom_call.1']
  #allocation4 [shape = 's32[1]{0:T(128)S(6)}', space=smem, size = 0x200, scoped, tag = 'prefetched SMEM operand 0']
  #allocation5 [shape = 's32[1]{0:T(128)S(6)}', space=smem, size = 0x200, scoped, tag = 'prefetched SMEM operand 1']
  %s0 = inlined_call_operand.<no memory space> [shape: s32[1], index: 0, kind: input, shape index: {}]
  %s1 = inlined_call_operand.<no memory space> [shape: s32[1], index: 1, kind: input, shape index: {}]
  %s2 = inlined_call_operand.vmem [shape: f32[128,16], index: 2, kind: input, shape index: {}]
  %s3 = inlined_call_operand.vmem [shape: f32[256,16], index: 3, kind: input, shape index: {}]
  %s4 = inlined_call_operand.vmem [shape: f32[256,8], index: 4, kind: input, shape index: {}]
  %s5 = inlined_call_operand.vmem [shape: s32[1,1,256], index: 5, kind: input, shape index: {}]
  %s6 = inlined_call_operand.vmem [shape: f32[8,16], index: 6, kind: input, shape index: {}]
  %s7 = inlined_call_operand.vmem [shape: f32[1,16], index: 7, kind: input, shape index: {}]
  %s8 = inlined_call_operand.vmem [shape: f32[16,128], index: 8, kind: input, shape index: {}]
  %s9 = inlined_call_operand.vmem [shape: f32[1,128], index: 9, kind: input, shape index: {}]
  %s10 = inlined_call_operand.vmem [shape: f32[128,128], index: 10, kind: input, shape index: {}]
  %s11 = inlined_call_operand.vmem [shape: f32[1,128], index: 11, kind: input, shape index: {}]
  %s12 = inlined_call_operand.hbm [shape: f32[128,128], index: 12, kind: output, shape index: {}]
  %s13 = sld [smem:[#allocation0]]
  $region62: #{tpu_custom_call.1} parent=0
    _
  %s15 = ssub.s32 1, %s13
  %s16 = scalar_select 0, %s15, %s13
  %17 = sst [smem:[#allocation4]] %s0
  %18 = sst [smem:[#allocation5]] %s1
  $region1: #{tpu_custom_call.1} parent=0
    #allocation6 [shape = 'u8[65536]{0}', space=vmem, size = 0x10000, scoped, tag = 'output window, operand 0, single buffered']
    #allocation7 [shape = 's32[1]{0}', space=sflag, size = 0x4, scoped, tag = 'scoped memory for tpu_custom_call.1']
    %19 = vsyncpa [#allocation7], 0
    // Predicated region
    $region2: #{tpu_custom_call.1} parent=1 // pred_check
      _
    $region3: #{tpu_custom_call.1} parent=1 // pred_check_branch
      %21 = sbr.rel (0) target = $region5
    $region4: #{tpu_custom_call.1} parent=1 // pred_region
      _
    $region5: #{tpu_custom_call.1} parent=1 // pred_fallthru
      _
    // Predicated region
    $region6: #{tpu_custom_call.1} parent=1 // pred_check
      _
    $region7: #{tpu_custom_call.1} parent=1 // pred_check_branch
      %23 = sbr.rel (0) target = $region9
    $region8: #{tpu_custom_call.1} parent=1 // pred_region
      %s24 = sld [smem:[#allocation4]]
      %s25 = sld [smem:[#allocation5]]
      %s26 = ssub.s32 %s25, 1
      %p27 = scmp.gt.s32.totalorder %s26, %s24
      %s28 = scalar_select %p27, %s26, %s24
      %p29 = scmp.gt.s32.totalorder 0, %s24
      %s30 = scalar_select %p29, 0, %s24
      %p31 = scmp.lt.s32.totalorder %s30, %s28
      %s32 = scalar_select %p31, %s30, %s28
      %s33 = smul.u32 32, %s32
      %p34 = scmp.lt.s32.totalorder %s33, 31
      %s35 = scalar_select %p34, %s33, 31
      %s36 = smul.addr %s35, 8
      %s37 = scalar_lea.vmem %s3, %s36
      %s38 = sld [smem:[#allocation4]]
      %s39 = sld [smem:[#allocation5]]
      %s40 = ssub.s32 %s39, 1
      %p41 = scmp.gt.s32.totalorder %s40, %s38
      %s42 = scalar_select %p41, %s40, %s38
      %p43 = scmp.gt.s32.totalorder 0, %s38
      %s44 = scalar_select %p43, 0, %s38
      %p45 = scmp.lt.s32.totalorder %s44, %s42
      %s46 = scalar_select %p45, %s44, %s42
      %s47 = smul.u32 32, %s46
    $region9: #{tpu_custom_call.1} parent=1 // pred_fallthru
      _
    // Predicated region
    $region10: #{tpu_custom_call.1} parent=1 // pred_check
      _
    $region11: #{tpu_custom_call.1} parent=1 // pred_check_branch
      %49 = sbr.rel (0) target = $region13
    $region12: #{tpu_custom_call.1} parent=1 // pred_region
      %s50 = sld [smem:[#allocation4]]
      %s51 = sld [smem:[#allocation5]]
      %s52 = ssub.s32 %s51, 1
      %p53 = scmp.gt.s32.totalorder %s52, %s50
      %s54 = scalar_select %p53, %s52, %s50
      %p55 = scmp.gt.s32.totalorder 0, %s50
      %s56 = scalar_select %p55, 0, %s50
      %p57 = scmp.lt.s32.totalorder %s56, %s54
      %s58 = scalar_select %p57, %s56, %s54
      %s59 = smul.u32 32, %s58
      %p60 = scmp.lt.s32.totalorder %s59, 31
      %s61 = scalar_select %p60, %s59, 31
      %s62 = smul.addr %s61, 8
      %s63 = scalar_lea.vmem %s4, %s62
      %s64 = sld [smem:[#allocation4]]
      %s65 = sld [smem:[#allocation5]]
      %s66 = ssub.s32 %s65, 1
      %p67 = scmp.gt.s32.totalorder %s66, %s64
      %s68 = scalar_select %p67, %s66, %s64
      %p69 = scmp.gt.s32.totalorder 0, %s64
      %s70 = scalar_select %p69, 0, %s64
      %p71 = scmp.lt.s32.totalorder %s70, %s68
      %s72 = scalar_select %p71, %s70, %s68
      %s73 = smul.u32 32, %s72
    $region13: #{tpu_custom_call.1} parent=1 // pred_fallthru
      _
    // Predicated region
    $region14: #{tpu_custom_call.1} parent=1 // pred_check
      _
    $region15: #{tpu_custom_call.1} parent=1 // pred_check_branch
      %75 = sbr.rel (0) target = $region17
    $region16: #{tpu_custom_call.1} parent=1 // pred_region
      %s76 = sld [smem:[#allocation4]]
      %s77 = sld [smem:[#allocation5]]
      %s78 = ssub.s32 %s77, 1
      %p79 = scmp.gt.s32.totalorder %s78, %s76
      %s80 = scalar_select %p79, %s78, %s76
      %p81 = scmp.gt.s32.totalorder 0, %s76
      %s82 = scalar_select %p81, 0, %s76
      %p83 = scmp.lt.s32.totalorder %s82, %s80
      %s84 = scalar_select %p83, %s82, %s80
      %p85 = scmp.lt.s32.totalorder %s84, 0
      %s86 = scalar_select %p85, %s84, 0
      %s87 = smul.addr %s86, 2
      %s88 = scalar_lea.vmem %s5, %s87
      %s89 = sld [smem:[#allocation4]]
      %s90 = sld [smem:[#allocation5]]
      %s91 = ssub.s32 %s90, 1
      %p92 = scmp.gt.s32.totalorder %s91, %s89
      %s93 = scalar_select %p92, %s91, %s89
      %p94 = scmp.gt.s32.totalorder 0, %s89
      %s95 = scalar_select %p94, 0, %s89
      %p96 = scmp.lt.s32.totalorder %s95, %s93
      %s97 = scalar_select %p96, %s95, %s93
    $region17: #{tpu_custom_call.1} parent=1 // pred_fallthru
      _
    // Predicated region
    $region18: #{tpu_custom_call.1} parent=1 // pred_check
      _
    $region19: #{tpu_custom_call.1} parent=1 // pred_check_branch
      %99 = sbr.rel (0) target = $region21
    $region20: #{tpu_custom_call.1} parent=1 // pred_region
      _
    $region21: #{tpu_custom_call.1} parent=1 // pred_fallthru
      _
    // Predicated region
    $region22: #{tpu_custom_call.1} parent=1 // pred_check
      _
    $region23: #{tpu_custom_call.1} parent=1 // pred_check_branch
      %101 = sbr.rel (0) target = $region25
    $region24: #{tpu_custom_call.1} parent=1 // pred_region
      _
    $region25: #{tpu_custom_call.1} parent=1 // pred_fallthru
      _
    // Predicated region
    $region26: #{tpu_custom_call.1} parent=1 // pred_check
      _
    $region27: #{tpu_custom_call.1} parent=1 // pred_check_branch
      %103 = sbr.rel (0) target = $region29
    $region28: #{tpu_custom_call.1} parent=1 // pred_region
      _
    $region29: #{tpu_custom_call.1} parent=1 // pred_fallthru
      _
    // Predicated region
    $region30: #{tpu_custom_call.1} parent=1 // pred_check
      _
    $region31: #{tpu_custom_call.1} parent=1 // pred_check_branch
      %105 = sbr.rel (0) target = $region33
    $region32: #{tpu_custom_call.1} parent=1 // pred_region
      _
    $region33: #{tpu_custom_call.1} parent=1 // pred_fallthru
      _
    // Predicated region
    $region34: #{tpu_custom_call.1} parent=1 // pred_check
      _
    $region35: #{tpu_custom_call.1} parent=1 // pred_check_branch
      %107 = sbr.rel (0) target = $region37
    $region36: #{tpu_custom_call.1} parent=1 // pred_region
      _
    $region37: #{tpu_custom_call.1} parent=1 // pred_fallthru
      _
    // Predicated region
    $region38: #{tpu_custom_call.1} parent=1 // pred_check
      _
    $region39: #{tpu_custom_call.1} parent=1 // pred_check_branch
      %109 = sbr.rel (0) target = $region41
    $region40: #{tpu_custom_call.1} parent=1 // pred_region
      _
    $region41: #{tpu_custom_call.1} parent=1 // pred_fallthru
      _
    %s110 = sld [smem:[#allocation4]]
    %s111 = sld [smem:[#allocation5]]
    %s112 = ssub.s32 %s111, 1
    %p113 = scmp.gt.s32.totalorder %s112, %s110
    %s114 = scalar_select %p113, %s112, %s110
    %p115 = scmp.gt.s32.totalorder 0, %s110
    %s116 = scalar_select %p115, 0, %s110
    %p117 = scmp.lt.s32.totalorder %s116, %s114
    %s118 = scalar_select %p117, %s116, %s114
    %s119 = smul.u32 32, %s118
    %p120 = scmp.lt.s32.totalorder %s119, 31
    %s121 = scalar_select %p120, %s119, 31
    %s122 = smul.addr %s121, 8
    %s123 = scalar_lea.vmem %s3, %s122
    %s124 = sld [smem:[#allocation4]]
    %s125 = sld [smem:[#allocation5]]
    %s126 = ssub.s32 %s125, 1
    %p127 = scmp.gt.s32.totalorder %s126, %s124
    %s128 = scalar_select %p127, %s126, %s124
    %p129 = scmp.gt.s32.totalorder 0, %s124
    %s130 = scalar_select %p129, 0, %s124
    %p131 = scmp.lt.s32.totalorder %s130, %s128
    %s132 = scalar_select %p131, %s130, %s128
    %s133 = smul.u32 32, %s132
    %p134 = scmp.lt.s32.totalorder %s133, 31
    %s135 = scalar_select %p134, %s133, 31
    %s136 = smul.addr %s135, 8
    %s137 = scalar_lea.vmem %s4, %s136
    %s138 = sld [smem:[#allocation4]]
    %s139 = sld [smem:[#allocation5]]
    %s140 = ssub.s32 %s139, 1
    %p141 = scmp.gt.s32.totalorder %s140, %s138
    %s142 = scalar_select %p141, %s140, %s138
    %p143 = scmp.gt.s32.totalorder 0, %s138
    %s144 = scalar_select %p143, 0, %s138
    %p145 = scmp.lt.s32.totalorder %s144, %s142
    %s146 = scalar_select %p145, %s144, %s142
    %p147 = scmp.lt.s32.totalorder %s146, 0
    %s148 = scalar_select %p147, %s146, 0
    %s149 = smul.addr %s148, 2
    %s150 = scalar_lea.vmem %s5, %s149
    %s151 = sld [smem:[#allocation4]]
    %s152 = sld [smem:[#allocation5]]
    %s153 = ssub.s32 %s152, 1
    %p154 = scmp.gt.s32.totalorder %s153, %s151
    %s155 = scalar_select %p154, %s153, %s151
    %p156 = scmp.gt.s32.totalorder 0, %s151
    %s157 = scalar_select %p156, 0, %s151
    %p158 = scmp.lt.s32.totalorder %s157, %s155
    %s159 = scalar_select %p158, %s157, %s155
    %s160 = smul.u32 32, %s159
    %p161 = scmp.lt.s32.totalorder %s160, 31
    %s162 = scalar_select %p161, %s160, 31
    %s163 = smul.addr %s162, 8
    %s164 = scalar_lea.vmem %s3, %s163
    %s165 = sld [smem:[#allocation4]]
    %s166 = sld [smem:[#allocation5]]
    %s167 = ssub.s32 %s166, 1
    %p168 = scmp.gt.s32.totalorder %s167, %s165
    %s169 = scalar_select %p168, %s167, %s165
    %p170 = scmp.gt.s32.totalorder 0, %s165
    %s171 = scalar_select %p170, 0, %s165
    %p172 = scmp.lt.s32.totalorder %s171, %s169
    %s173 = scalar_select %p172, %s171, %s169
    %s174 = smul.u32 32, %s173
    %s175 = sld [smem:[#allocation4]]
    %s176 = sld [smem:[#allocation5]]
    %s177 = ssub.s32 %s176, 1
    %p178 = scmp.gt.s32.totalorder %s177, %s175
    %s179 = scalar_select %p178, %s177, %s175
    %p180 = scmp.gt.s32.totalorder 0, %s175
    %s181 = scalar_select %p180, 0, %s175
    %p182 = scmp.lt.s32.totalorder %s181, %s179
    %s183 = scalar_select %p182, %s181, %s179
    %s184 = smul.u32 32, %s183
    %p185 = scmp.lt.s32.totalorder %s184, 31
    %s186 = scalar_select %p185, %s184, 31
    %s187 = smul.addr %s186, 8
    %s188 = scalar_lea.vmem %s4, %s187
    %s189 = sld [smem:[#allocation4]]
    %s190 = sld [smem:[#allocation5]]
    %s191 = ssub.s32 %s190, 1
    %p192 = scmp.gt.s32.totalorder %s191, %s189
    %s193 = scalar_select %p192, %s191, %s189
    %p194 = scmp.gt.s32.totalorder 0, %s189
    %s195 = scalar_select %p194, 0, %s189
    %p196 = scmp.lt.s32.totalorder %s195, %s193
    %s197 = scalar_select %p196, %s195, %s193
    %s198 = smul.u32 32, %s197
    %s199 = sld [smem:[#allocation4]]
    %s200 = sld [smem:[#allocation5]]
    %s201 = ssub.s32 %s200, 1
    %p202 = scmp.gt.s32.totalorder %s201, %s199
    %s203 = scalar_select %p202, %s201, %s199
    %p204 = scmp.gt.s32.totalorder 0, %s199
    %s205 = scalar_select %p204, 0, %s199
    %p206 = scmp.lt.s32.totalorder %s205, %s203
    %s207 = scalar_select %p206, %s205, %s203
    %p208 = scmp.lt.s32.totalorder %s207, 0
    %s209 = scalar_select %p208, %s207, 0
    %s210 = smul.addr %s209, 2
    %s211 = scalar_lea.vmem %s5, %s210
    %s212 = sld [smem:[#allocation4]]
    %s213 = sld [smem:[#allocation5]]
    %s214 = ssub.s32 %s213, 1
    %p215 = scmp.gt.s32.totalorder %s214, %s212
    %s216 = scalar_select %p215, %s214, %s212
    %p217 = scmp.gt.s32.totalorder 0, %s212
    %s218 = scalar_select %p217, 0, %s212
    %p219 = scmp.lt.s32.totalorder %s218, %s216
    %s220 = scalar_select %p219, %s218, %s216
    %p221 = scmp.eq.s32.totalorder 0, 0
    // Predicated region
    $region42: #{tpu_custom_call.1} parent=1 // pred_check
      %p222 = pneg %p221
    $region43: #{tpu_custom_call.1} parent=1 // pred_check_branch
      %224 = sbr.rel (%p222) target = $region45
    $region44: #{tpu_custom_call.1} parent=1 // pred_region
      %vm225 = vcmask 130048
      %226 = vst.msk [vmem:[#allocation2] sm:$0xff] %vm225, 0.0
      %227 = vst.msk [vmem:[#allocation2 + $0x8] sm:$0xff] %vm225, 0.0
      %228 = vst.msk [vmem:[#allocation2 + $0x10] sm:$0xff] %vm225, 0.0
      %229 = vst.msk [vmem:[#allocation2 + $0x18] sm:$0xff] %vm225, 0.0
      %230 = vst.msk [vmem:[#allocation2 + $0x20] sm:$0xff] %vm225, 0.0
      %231 = vst.msk [vmem:[#allocation2 + $0x28] sm:$0xff] %vm225, 0.0
      %232 = vst.msk [vmem:[#allocation2 + $0x30] sm:$0xff] %vm225, 0.0
      %233 = vst.msk [vmem:[#allocation2 + $0x38] sm:$0xff] %vm225, 0.0
      %234 = vst.msk [vmem:[#allocation2 + $0x40] sm:$0xff] %vm225, 0.0
      %235 = vst.msk [vmem:[#allocation2 + $0x48] sm:$0xff] %vm225, 0.0
      %236 = vst.msk [vmem:[#allocation2 + $0x50] sm:$0xff] %vm225, 0.0
      %237 = vst.msk [vmem:[#allocation2 + $0x58] sm:$0xff] %vm225, 0.0
      %238 = vst.msk [vmem:[#allocation2 + $0x60] sm:$0xff] %vm225, 0.0
      %239 = vst.msk [vmem:[#allocation2 + $0x68] sm:$0xff] %vm225, 0.0
      %240 = vst.msk [vmem:[#allocation2 + $0x70] sm:$0xff] %vm225, 0.0
      %241 = vst.msk [vmem:[#allocation2 + $0x78] sm:$0xff] %vm225, 0.0
    $region45: #{tpu_custom_call.1} parent=1 // pred_fallthru
      _
    %s242 = sld [smem:[#allocation4]]
    %s243 = sld [smem:[#allocation5]]
    %p244 = scmp.ge.s32.totalorder 0, %s242
    %p245 = scmp.lt.s32.totalorder 0, %s243
    %p246 = pnand %p244, %p245
    %p247 = pneg %p246
    // Predicated region
    $region46: #{tpu_custom_call.1} parent=1 // pred_check
      _
    $region47: #{tpu_custom_call.1} parent=1 // pred_check_branch
      %249 = sbr.rel (%p246) target = $region49
    $region48: #{tpu_custom_call.1} parent=1 // pred_region
      %v250 = vld [vmem:[%s188] sm:$0xff]
      %v251 = vld [vmem:[%s188 + $0x8] sm:$0xff]
      %v252 = vld [vmem:[%s188 + $0x10] sm:$0xff]
      %v253 = vld [vmem:[%s188 + $0x18] sm:$0xff]
      %v254 = vld [vmem:[%s188 + $0x20] sm:$0xff]
      %v255 = vld [vmem:[%s188 + $0x28] sm:$0xff]
      %v256 = vld [vmem:[%s188 + $0x30] sm:$0xff]
      %v257 = vld [vmem:[%s188 + $0x38] sm:$0xff]
      %v258 = vld [vmem:[%s188 + $0x40] sm:$0xff]
      %v259 = vld [vmem:[%s188 + $0x48] sm:$0xff]
      %v260 = vld [vmem:[%s188 + $0x50] sm:$0xff]
      %v261 = vld [vmem:[%s188 + $0x58] sm:$0xff]
      %v262 = vld [vmem:[%s188 + $0x60] sm:$0xff]
      %v263 = vld [vmem:[%s188 + $0x68] sm:$0xff]
      %v264 = vld [vmem:[%s188 + $0x70] sm:$0xff]
      %v265 = vld [vmem:[%s188 + $0x78] sm:$0xff]
      %v266 = vld [vmem:[%s188 + $0x80] sm:$0xff]
      %v267 = vld [vmem:[%s188 + $0x88] sm:$0xff]
      %v268 = vld [vmem:[%s188 + $0x90] sm:$0xff]
      %v269 = vld [vmem:[%s188 + $0x98] sm:$0xff]
      %v270 = vld [vmem:[%s188 + $0xa0] sm:$0xff]
      %v271 = vld [vmem:[%s188 + $0xa8] sm:$0xff]
      %v272 = vld [vmem:[%s188 + $0xb0] sm:$0xff]
      %v273 = vld [vmem:[%s188 + $0xb8] sm:$0xff]
      %v274 = vld [vmem:[%s188 + $0xc0] sm:$0xff]
      %v275 = vld [vmem:[%s188 + $0xc8] sm:$0xff]
      %v276 = vld [vmem:[%s188 + $0xd0] sm:$0xff]
      %v277 = vld [vmem:[%s188 + $0xd8] sm:$0xff]
      %v278 = vld [vmem:[%s188 + $0xe0] sm:$0xff]
      %v279 = vld [vmem:[%s188 + $0xe8] sm:$0xff]
      %v280 = vld [vmem:[%s188 + $0xf0] sm:$0xff]
      %v281 = vld [vmem:[%s188 + $0xf8] sm:$0xff]
      %v282 = vld [vmem:[%s6] sm:$0xff]
      %vm283 = vcmask 64512
      %v285 = vsel %vm283, %v250, 0
      %v288 = vsel %vm283, %v251, 0
      %v291 = vsel %vm283, %v252, 0
      %v294 = vsel %vm283, %v253, 0
      %v297 = vsel %vm283, %v254, 0
      %v300 = vsel %vm283, %v255, 0
      %v303 = vsel %vm283, %v256, 0
      %v306 = vsel %vm283, %v257, 0
      %v309 = vsel %vm283, %v258, 0
      %v312 = vsel %vm283, %v259, 0
      %v315 = vsel %vm283, %v260, 0
      %v318 = vsel %vm283, %v261, 0
      %v321 = vsel %vm283, %v262, 0
      %v324 = vsel %vm283, %v263, 0
      %v327 = vsel %vm283, %v264, 0
      %v330 = vsel %vm283, %v265, 0
      %v333 = vsel %vm283, %v266, 0
      %v336 = vsel %vm283, %v267, 0
      %v339 = vsel %vm283, %v268, 0
      %v342 = vsel %vm283, %v269, 0
      %v345 = vsel %vm283, %v270, 0
      %v348 = vsel %vm283, %v271, 0
      %v351 = vsel %vm283, %v272, 0
      %v354 = vsel %vm283, %v273, 0
      %v357 = vsel %vm283, %v274, 0
      %v360 = vsel %vm283, %v275, 0
      %v363 = vsel %vm283, %v276, 0
      %v366 = vsel %vm283, %v277, 0
      %v369 = vsel %vm283, %v278, 0
      %v372 = vsel %vm283, %v279, 0
      %v375 = vsel %vm283, %v280, 0
      %v378 = vsel %vm283, %v281, 0
      %380 = vmatprep.subr.mxu0 0.0
      %381 = vmatpush1.msra.mxu0 0.0
      %382 = vmatprep.subr.mxu0 0.0
      %383 = vmatpush1.msra.mxu0 0.0
      %384 = vmatprep.subr.mxu0 0.0
      %385 = vmatpush1.msra.mxu0 0.0
      %386 = vmatprep.subr.mxu0 0.0
      %387 = vmatpush1.msra.mxu0 0.0
      %388 = vmatprep.subr.mxu0 0.0
      %389 = vmatpush1.msra.mxu0 0.0
      %390 = vmatprep.subr.mxu0 0.0
      %391 = vmatpush1.msra.mxu0 0.0
      %392 = vmatprep.subr.mxu0 0.0
      %393 = vmatpush1.msra.mxu0 0.0
      %394 = vmatprep.subr.mxu0 0.0
      %395 = vmatpush1.msra.mxu0 0.0
      %396 = vmatprep.subr.mxu0 0.0
      %397 = vmatpush1.msra.mxu0 0.0
      %398 = vmatprep.subr.mxu0 0.0
      %399 = vmatpush1.msra.mxu0 0.0
      %400 = vmatprep.subr.mxu0 0.0
      %401 = vmatpush1.msra.mxu0 0.0
      %402 = vmatprep.subr.mxu0 0.0
      %403 = vmatpush1.msra.mxu0 0.0
      %404 = vmatprep.subr.mxu0 0.0
      %405 = vmatpush1.msra.mxu0 0.0
      %406 = vmatprep.subr.mxu0 0.0
      %407 = vmatpush1.msra.mxu0 0.0
      %408 = vmatprep.subr.mxu0 0.0
      %409 = vmatpush1.msra.mxu0 0.0
      %410 = vmatprep.subr.mxu0 0.0
      %411 = vmatpush1.msra.mxu0 %v282
      %412 = vmatprep.subr.mxu0 0.0
      %413 = vmatpush2.msra.mxu0 0.0
      %414 = vmatprep.subr.mxu0 0.0
      %415 = vmatpush2.msra.mxu0 0.0
      %416 = vmatprep.subr.mxu0 0.0
      %417 = vmatpush2.msra.mxu0 0.0
      %418 = vmatprep.subr.mxu0 0.0
      %419 = vmatpush2.msra.mxu0 0.0
      %420 = vmatprep.subr.mxu0 0.0
      %421 = vmatpush2.msra.mxu0 0.0
      %422 = vmatprep.subr.mxu0 0.0
      %423 = vmatpush2.msra.mxu0 0.0
      %424 = vmatprep.subr.mxu0 0.0
      %425 = vmatpush2.msra.mxu0 0.0
      %426 = vmatprep.subr.mxu0 0.0
      %427 = vmatpush2.msra.mxu0 0.0
      %428 = vmatprep.subr.mxu0 0.0
      %429 = vmatpush2.msra.mxu0 0.0
      %430 = vmatprep.subr.mxu0 0.0
      %431 = vmatpush2.msra.mxu0 0.0
      %432 = vmatprep.subr.mxu0 0.0
      %433 = vmatpush2.msra.mxu0 0.0
      %434 = vmatprep.subr.mxu0 0.0
      %435 = vmatpush2.msra.mxu0 0.0
      %436 = vmatprep.subr.mxu0 0.0
      %437 = vmatpush2.msra.mxu0 0.0
      %438 = vmatprep.subr.mxu0 0.0
      %439 = vmatpush2.msra.mxu0 0.0
      %440 = vmatprep.subr.mxu0 0.0
      %441 = vmatpush2.msra.mxu0 0.0
      %442 = vmatprep.subr.mxu0 0.0
      %443 = vmatpush2.msra.mxu0 0.0
      %444 = vmatprep.mubr.f32.mxu0 0.0
      %445 = vmatmul.mubr.f32.gmra.mxu0 %v285
      %v446 = vpop.f32.mrf.mxu0
      %v447 = vadd.f32 0.0, %v446
      %v448 = vpop.f32.mrf.mxu0
      %449 = vmatprep.mubr.f32.mxu0 0.0
      %450 = vmatmul.mubr.f32.gmra.mxu0 %v288
      %v451 = vpop.f32.mrf.mxu0
      %v452 = vadd.f32 0.0, %v451
      %v453 = vpop.f32.mrf.mxu0
      %454 = vmatprep.mubr.f32.mxu0 0.0
      %455 = vmatmul.mubr.f32.gmra.mxu0 %v291
      %v456 = vpop.f32.mrf.mxu0
      %v457 = vadd.f32 0.0, %v456
      %v458 = vpop.f32.mrf.mxu0
      %459 = vmatprep.mubr.f32.mxu0 0.0
      %460 = vmatmul.mubr.f32.gmra.mxu0 %v294
      %v461 = vpop.f32.mrf.mxu0
      %v462 = vadd.f32 0.0, %v461
      %v463 = vpop.f32.mrf.mxu0
      %464 = vmatprep.mubr.f32.mxu0 0.0
      %465 = vmatmul.mubr.f32.gmra.mxu0 %v297
      %v466 = vpop.f32.mrf.mxu0
      %v467 = vadd.f32 0.0, %v466
      %v468 = vpop.f32.mrf.mxu0
      %469 = vmatprep.mubr.f32.mxu0 0.0
      %470 = vmatmul.mubr.f32.gmra.mxu0 %v300
      %v471 = vpop.f32.mrf.mxu0
      %v472 = vadd.f32 0.0, %v471
      %v473 = vpop.f32.mrf.mxu0
      %474 = vmatprep.mubr.f32.mxu0 0.0
      %475 = vmatmul.mubr.f32.gmra.mxu0 %v303
      %v476 = vpop.f32.mrf.mxu0
      %v477 = vadd.f32 0.0, %v476
      %v478 = vpop.f32.mrf.mxu0
      %479 = vmatprep.mubr.f32.mxu0 0.0
      %480 = vmatmul.mubr.f32.gmra.mxu0 %v306
      %v481 = vpop.f32.mrf.mxu0
      %v482 = vadd.f32 0.0, %v481
      %v483 = vpop.f32.mrf.mxu0
      %484 = vmatprep.mubr.f32.mxu0 0.0
      %485 = vmatmul.mubr.f32.gmra.mxu0 %v309
      %v486 = vpop.f32.mrf.mxu0
      %v487 = vadd.f32 0.0, %v486
      %v488 = vpop.f32.mrf.mxu0
      %489 = vmatprep.mubr.f32.mxu0 0.0
      %490 = vmatmul.mubr.f32.gmra.mxu0 %v312
      %v491 = vpop.f32.mrf.mxu0
      %v492 = vadd.f32 0.0, %v491
      %v493 = vpop.f32.mrf.mxu0
      %494 = vmatprep.mubr.f32.mxu0 0.0
      %495 = vmatmul.mubr.f32.gmra.mxu0 %v315
      %v496 = vpop.f32.mrf.mxu0
      %v497 = vadd.f32 0.0, %v496
      %v498 = vpop.f32.mrf.mxu0
      %499 = vmatprep.mubr.f32.mxu0 0.0
      %500 = vmatmul.mubr.f32.gmra.mxu0 %v318
      %v501 = vpop.f32.mrf.mxu0
      %v502 = vadd.f32 0.0, %v501
      %v503 = vpop.f32.mrf.mxu0
      %504 = vmatprep.mubr.f32.mxu0 0.0
      %505 = vmatmul.mubr.f32.gmra.mxu0 %v321
      %v506 = vpop.f32.mrf.mxu0
      %v507 = vadd.f32 0.0, %v506
      %v508 = vpop.f32.mrf.mxu0
      %509 = vmatprep.mubr.f32.mxu0 0.0
      %510 = vmatmul.mubr.f32.gmra.mxu0 %v324
      %v511 = vpop.f32.mrf.mxu0
      %v512 = vadd.f32 0.0, %v511
      %v513 = vpop.f32.mrf.mxu0
      %514 = vmatprep.mubr.f32.mxu0 0.0
      %515 = vmatmul.mubr.f32.gmra.mxu0 %v327
      %v516 = vpop.f32.mrf.mxu0
      %v517 = vadd.f32 0.0, %v516
      %v518 = vpop.f32.mrf.mxu0
      %519 = vmatprep.mubr.f32.mxu0 0.0
      %520 = vmatmul.mubr.f32.gmra.mxu0 %v330
      %v521 = vpop.f32.mrf.mxu0
      %v522 = vadd.f32 0.0, %v521
      %v523 = vpop.f32.mrf.mxu0
      %524 = vmatprep.mubr.f32.mxu0 0.0
      %525 = vmatmul.mubr.f32.gmra.mxu0 %v333
      %v526 = vpop.f32.mrf.mxu0
      %v527 = vadd.f32 0.0, %v526
      %v528 = vpop.f32.mrf.mxu0
      %529 = vmatprep.mubr.f32.mxu0 0.0
      %530 = vmatmul.mubr.f32.gmra.mxu0 %v336
      %v531 = vpop.f32.mrf.mxu0
      %v532 = vadd.f32 0.0, %v531
      %v533 = vpop.f32.mrf.mxu0
      %534 = vmatprep.mubr.f32.mxu0 0.0
      %535 = vmatmul.mubr.f32.gmra.mxu0 %v339
      %v536 = vpop.f32.mrf.mxu0
      %v537 = vadd.f32 0.0, %v536
      %v538 = vpop.f32.mrf.mxu0
      %539 = vmatprep.mubr.f32.mxu0 0.0
      %540 = vmatmul.mubr.f32.gmra.mxu0 %v342
      %v541 = vpop.f32.mrf.mxu0
      %v542 = vadd.f32 0.0, %v541
      %v543 = vpop.f32.mrf.mxu0
      %544 = vmatprep.mubr.f32.mxu0 0.0
      %545 = vmatmul.mubr.f32.gmra.mxu0 %v345
      %v546 = vpop.f32.mrf.mxu0
      %v547 = vadd.f32 0.0, %v546
      %v548 = vpop.f32.mrf.mxu0
      %549 = vmatprep.mubr.f32.mxu0 0.0
      %550 = vmatmul.mubr.f32.gmra.mxu0 %v348
      %v551 = vpop.f32.mrf.mxu0
      %v552 = vadd.f32 0.0, %v551
      %v553 = vpop.f32.mrf.mxu0
      %554 = vmatprep.mubr.f32.mxu0 0.0
      %555 = vmatmul.mubr.f32.gmra.mxu0 %v351
      %v556 = vpop.f32.mrf.mxu0
      %v557 = vadd.f32 0.0, %v556
      %v558 = vpop.f32.mrf.mxu0
      %559 = vmatprep.mubr.f32.mxu0 0.0
      %560 = vmatmul.mubr.f32.gmra.mxu0 %v354
      %v561 = vpop.f32.mrf.mxu0
      %v562 = vadd.f32 0.0, %v561
      %v563 = vpop.f32.mrf.mxu0
      %564 = vmatprep.mubr.f32.mxu0 0.0
      %565 = vmatmul.mubr.f32.gmra.mxu0 %v357
      %v566 = vpop.f32.mrf.mxu0
      %v567 = vadd.f32 0.0, %v566
      %v568 = vpop.f32.mrf.mxu0
      %569 = vmatprep.mubr.f32.mxu0 0.0
      %570 = vmatmul.mubr.f32.gmra.mxu0 %v360
      %v571 = vpop.f32.mrf.mxu0
      %v572 = vadd.f32 0.0, %v571
      %v573 = vpop.f32.mrf.mxu0
      %574 = vmatprep.mubr.f32.mxu0 0.0
      %575 = vmatmul.mubr.f32.gmra.mxu0 %v363
      %v576 = vpop.f32.mrf.mxu0
      %v577 = vadd.f32 0.0, %v576
      %v578 = vpop.f32.mrf.mxu0
      %579 = vmatprep.mubr.f32.mxu0 0.0
      %580 = vmatmul.mubr.f32.gmra.mxu0 %v366
      %v581 = vpop.f32.mrf.mxu0
      %v582 = vadd.f32 0.0, %v581
      %v583 = vpop.f32.mrf.mxu0
      %584 = vmatprep.mubr.f32.mxu0 0.0
      %585 = vmatmul.mubr.f32.gmra.mxu0 %v369
      %v586 = vpop.f32.mrf.mxu0
      %v587 = vadd.f32 0.0, %v586
      %v588 = vpop.f32.mrf.mxu0
      %589 = vmatprep.mubr.f32.mxu0 0.0
      %590 = vmatmul.mubr.f32.gmra.mxu0 %v372
      %v591 = vpop.f32.mrf.mxu0
      %v592 = vadd.f32 0.0, %v591
      %v593 = vpop.f32.mrf.mxu0
      %594 = vmatprep.mubr.f32.mxu0 0.0
      %595 = vmatmul.mubr.f32.gmra.mxu0 %v375
      %v596 = vpop.f32.mrf.mxu0
      %v597 = vadd.f32 0.0, %v596
      %v598 = vpop.f32.mrf.mxu0
      %599 = vmatprep.mubr.f32.mxu0 0.0
      %600 = vmatmul.mubr.f32.gmra.mxu0 %v378
      %v601 = vpop.f32.mrf.mxu0
      %v602 = vadd.f32 0.0, %v601
      %v603 = vpop.f32.mrf.mxu0
      %604 = vdwg.mxu0
      %v605 = vld [vmem:[%s164] sm:$0xff]
      %v606 = vld [vmem:[%s164 + $0x8] sm:$0xff]
      %v607 = vld [vmem:[%s164 + $0x10] sm:$0xff]
      %v608 = vld [vmem:[%s164 + $0x18] sm:$0xff]
      %v609 = vld [vmem:[%s164 + $0x20] sm:$0xff]
      %v610 = vld [vmem:[%s164 + $0x28] sm:$0xff]
      %v611 = vld [vmem:[%s164 + $0x30] sm:$0xff]
      %v612 = vld [vmem:[%s164 + $0x38] sm:$0xff]
      %v613 = vld [vmem:[%s164 + $0x40] sm:$0xff]
      %v614 = vld [vmem:[%s164 + $0x48] sm:$0xff]
      %v615 = vld [vmem:[%s164 + $0x50] sm:$0xff]
      %v616 = vld [vmem:[%s164 + $0x58] sm:$0xff]
      %v617 = vld [vmem:[%s164 + $0x60] sm:$0xff]
      %v618 = vld [vmem:[%s164 + $0x68] sm:$0xff]
      %v619 = vld [vmem:[%s164 + $0x70] sm:$0xff]
      %v620 = vld [vmem:[%s164 + $0x78] sm:$0xff]
      %v621 = vld [vmem:[%s164 + $0x80] sm:$0xff]
      %v622 = vld [vmem:[%s164 + $0x88] sm:$0xff]
      %v623 = vld [vmem:[%s164 + $0x90] sm:$0xff]
      %v624 = vld [vmem:[%s164 + $0x98] sm:$0xff]
      %v625 = vld [vmem:[%s164 + $0xa0] sm:$0xff]
      %v626 = vld [vmem:[%s164 + $0xa8] sm:$0xff]
      %v627 = vld [vmem:[%s164 + $0xb0] sm:$0xff]
      %v628 = vld [vmem:[%s164 + $0xb8] sm:$0xff]
      %v629 = vld [vmem:[%s164 + $0xc0] sm:$0xff]
      %v630 = vld [vmem:[%s164 + $0xc8] sm:$0xff]
      %v631 = vld [vmem:[%s164 + $0xd0] sm:$0xff]
      %v632 = vld [vmem:[%s164 + $0xd8] sm:$0xff]
      %v633 = vld [vmem:[%s164 + $0xe0] sm:$0xff]
      %v634 = vld [vmem:[%s164 + $0xe8] sm:$0xff]
      %v635 = vld [vmem:[%s164 + $0xf0] sm:$0xff]
      %v636 = vld [vmem:[%s164 + $0xf8] sm:$0xff]
      %v637 = vadd.f32 %v605, %v447
      %v638 = vadd.f32 %v606, %v452
      %v639 = vadd.f32 %v607, %v457
      %v640 = vadd.f32 %v608, %v462
      %v641 = vadd.f32 %v609, %v467
      %v642 = vadd.f32 %v610, %v472
      %v643 = vadd.f32 %v611, %v477
      %v644 = vadd.f32 %v612, %v482
      %v645 = vadd.f32 %v613, %v487
      %v646 = vadd.f32 %v614, %v492
      %v647 = vadd.f32 %v615, %v497
      %v648 = vadd.f32 %v616, %v502
      %v649 = vadd.f32 %v617, %v507
      %v650 = vadd.f32 %v618, %v512
      %v651 = vadd.f32 %v619, %v517
      %v652 = vadd.f32 %v620, %v522
      %v653 = vadd.f32 %v621, %v527
      %v654 = vadd.f32 %v622, %v532
      %v655 = vadd.f32 %v623, %v537
      %v656 = vadd.f32 %v624, %v542
      %v657 = vadd.f32 %v625, %v547
      %v658 = vadd.f32 %v626, %v552
      %v659 = vadd.f32 %v627, %v557
      %v660 = vadd.f32 %v628, %v562
      %v661 = vadd.f32 %v629, %v567
      %v662 = vadd.f32 %v630, %v572
      %v663 = vadd.f32 %v631, %v577
      %v664 = vadd.f32 %v632, %v582
      %v665 = vadd.f32 %v633, %v587
      %v666 = vadd.f32 %v634, %v592
      %v667 = vadd.f32 %v635, %v597
      %v668 = vadd.f32 %v636, %v602
      %v669 = vld [vmem:[%s7] sm:$0x1]
      %v671 = vlaneseq
      %v672 = vshrl.u32 %v671, 7
      %v673 = vsub.s32 0, %v672
      %v674 = vrot.slane %v669, %v673
      %v676 = vadd.f32 %v637, %v674
      %v677 = vadd.f32 %v638, %v674
      %v678 = vadd.f32 %v639, %v674
      %v679 = vadd.f32 %v640, %v674
      %v680 = vadd.f32 %v641, %v674
      %v681 = vadd.f32 %v642, %v674
      %v682 = vadd.f32 %v643, %v674
      %v683 = vadd.f32 %v644, %v674
      %v684 = vadd.f32 %v645, %v674
      %v685 = vadd.f32 %v646, %v674
      %v686 = vadd.f32 %v647, %v674
      %v687 = vadd.f32 %v648, %v674
      %v688 = vadd.f32 %v649, %v674
      %v689 = vadd.f32 %v650, %v674
      %v690 = vadd.f32 %v651, %v674
      %v691 = vadd.f32 %v652, %v674
      %v692 = vadd.f32 %v653, %v674
      %v693 = vadd.f32 %v654, %v674
      %v694 = vadd.f32 %v655, %v674
      %v695 = vadd.f32 %v656, %v674
      %v696 = vadd.f32 %v657, %v674
      %v697 = vadd.f32 %v658, %v674
      %v698 = vadd.f32 %v659, %v674
      %v699 = vadd.f32 %v660, %v674
      %v700 = vadd.f32 %v661, %v674
      %v701 = vadd.f32 %v662, %v674
      %v702 = vadd.f32 %v663, %v674
      %v703 = vadd.f32 %v664, %v674
      %v704 = vadd.f32 %v665, %v674
      %v705 = vadd.f32 %v666, %v674
      %v706 = vadd.f32 %v667, %v674
      %v707 = vadd.f32 %v668, %v674
      %v708 = vmax.f32 %v676, 0.0
      %v709 = vmax.f32 %v677, 0.0
      %v710 = vmax.f32 %v678, 0.0
      %v711 = vmax.f32 %v679, 0.0
      %v712 = vmax.f32 %v680, 0.0
      %v713 = vmax.f32 %v681, 0.0
      %v714 = vmax.f32 %v682, 0.0
      %v715 = vmax.f32 %v683, 0.0
      %v716 = vmax.f32 %v684, 0.0
      %v717 = vmax.f32 %v685, 0.0
      %v718 = vmax.f32 %v686, 0.0
      %v719 = vmax.f32 %v687, 0.0
      %v720 = vmax.f32 %v688, 0.0
      %v721 = vmax.f32 %v689, 0.0
      %v722 = vmax.f32 %v690, 0.0
      %v723 = vmax.f32 %v691, 0.0
      %v724 = vmax.f32 %v692, 0.0
      %v725 = vmax.f32 %v693, 0.0
      %v726 = vmax.f32 %v694, 0.0
      %v727 = vmax.f32 %v695, 0.0
      %v728 = vmax.f32 %v696, 0.0
      %v729 = vmax.f32 %v697, 0.0
      %v730 = vmax.f32 %v698, 0.0
      %v731 = vmax.f32 %v699, 0.0
      %v732 = vmax.f32 %v700, 0.0
      %v733 = vmax.f32 %v701, 0.0
      %v734 = vmax.f32 %v702, 0.0
      %v735 = vmax.f32 %v703, 0.0
      %v736 = vmax.f32 %v704, 0.0
      %v737 = vmax.f32 %v705, 0.0
      %v738 = vmax.f32 %v706, 0.0
      %v739 = vmax.f32 %v707, 0.0
      %s740 = smul.u32 0, 128
      %v741 = vlaneseq
      %v742 = vshrl.u32 %v741, 7
      %v743 = vadd.s32 %v742, 8
      %v744 = vadd.s32 %v742, 16
      %v745 = vadd.s32 %v742, 24
      %v746 = vadd.s32 %v742, 32
      %v747 = vadd.s32 %v742, 40
      %v748 = vadd.s32 %v742, 48
      %v749 = vadd.s32 %v742, 56
      %v750 = vadd.s32 %v742, 64
      %v751 = vadd.s32 %v742, 72
      %v752 = vadd.s32 %v742, 80
      %v753 = vadd.s32 %v742, 88
      %v754 = vadd.s32 %v742, 96
      %v755 = vadd.s32 %v742, 104
      %v756 = vadd.s32 %v742, 112
      %v757 = vadd.s32 %v742, 120
      %v758 = vstv %s740
      %v759 = vadd.s32 %v758, %v742
      %v760 = vadd.s32 %v758, %v743
      %v761 = vadd.s32 %v758, %v744
      %v762 = vadd.s32 %v758, %v745
      %v763 = vadd.s32 %v758, %v746
      %v764 = vadd.s32 %v758, %v747
      %v765 = vadd.s32 %v758, %v748
      %v766 = vadd.s32 %v758, %v749
      %v767 = vadd.s32 %v758, %v750
      %v768 = vadd.s32 %v758, %v751
      %v769 = vadd.s32 %v758, %v752
      %v770 = vadd.s32 %v758, %v753
      %v771 = vadd.s32 %v758, %v754
      %v772 = vadd.s32 %v758, %v755
      %v773 = vadd.s32 %v758, %v756
      %v774 = vadd.s32 %v758, %v757
      %v775 = vld [vmem:[%s211] sm:$0x3]
      %v776 = vlaneseq
      %v777 = vshrl.u32 %v776, 7
      %v778 = vsub.s32 0, %v777
      %v779 = vrot.slane %v775, %v778
      %v780 = vlaneseq
      %v781 = vshrl.u32 %v780, 7
      %v782 = vsub.s32 1, %v781
      %v783 = vrot.slane %v775, %v782
      %vm784 = vcmp.eq.s32.totalorder %v759, %v779
      %vm785 = vcmp.eq.s32.totalorder %v759, %v783
      %vm786 = vcmp.eq.s32.totalorder %v760, %v779
      %vm787 = vcmp.eq.s32.totalorder %v760, %v783
      %vm788 = vcmp.eq.s32.totalorder %v761, %v779
      %vm789 = vcmp.eq.s32.totalorder %v761, %v783
      %vm790 = vcmp.eq.s32.totalorder %v762, %v779
      %vm791 = vcmp.eq.s32.totalorder %v762, %v783
      %vm792 = vcmp.eq.s32.totalorder %v763, %v779
      %vm793 = vcmp.eq.s32.totalorder %v763, %v783
      %vm794 = vcmp.eq.s32.totalorder %v764, %v779
      %vm795 = vcmp.eq.s32.totalorder %v764, %v783
      %vm796 = vcmp.eq.s32.totalorder %v765, %v779
      %vm797 = vcmp.eq.s32.totalorder %v765, %v783
      %vm798 = vcmp.eq.s32.totalorder %v766, %v779
      %vm799 = vcmp.eq.s32.totalorder %v766, %v783
      %vm800 = vcmp.eq.s32.totalorder %v767, %v779
      %vm801 = vcmp.eq.s32.totalorder %v767, %v783
      %vm802 = vcmp.eq.s32.totalorder %v768, %v779
      %vm803 = vcmp.eq.s32.totalorder %v768, %v783
      %vm804 = vcmp.eq.s32.totalorder %v769, %v779
      %vm805 = vcmp.eq.s32.totalorder %v769, %v783
      %vm806 = vcmp.eq.s32.totalorder %v770, %v779
      %vm807 = vcmp.eq.s32.totalorder %v770, %v783
      %vm808 = vcmp.eq.s32.totalorder %v771, %v779
      %vm809 = vcmp.eq.s32.totalorder %v771, %v783
      %vm810 = vcmp.eq.s32.totalorder %v772, %v779
      %vm811 = vcmp.eq.s32.totalorder %v772, %v783
      %vm812 = vcmp.eq.s32.totalorder %v773, %v779
      %vm813 = vcmp.eq.s32.totalorder %v773, %v783
      %vm814 = vcmp.eq.s32.totalorder %v774, %v779
      %vm815 = vcmp.eq.s32.totalorder %v774, %v783
      %v816 = vsel %vm784, 1, 0
      %v817 = vsel %vm785, 1, 0
      %v818 = vsel %vm786, 1, 0
      %v819 = vsel %vm787, 1, 0
      %v820 = vsel %vm788, 1, 0
      %v821 = vsel %vm789, 1, 0
      %v822 = vsel %vm790, 1, 0
      %v823 = vsel %vm791, 1, 0
      %v824 = vsel %vm792, 1, 0
      %v825 = vsel %vm793, 1, 0
      %v826 = vsel %vm794, 1, 0
      %v827 = vsel %vm795, 1, 0
      %v828 = vsel %vm796, 1, 0
      %v829 = vsel %vm797, 1, 0
      %v830 = vsel %vm798, 1, 0
      %v831 = vsel %vm799, 1, 0
      %v832 = vsel %vm800, 1, 0
      %v833 = vsel %vm801, 1, 0
      %v834 = vsel %vm802, 1, 0
      %v835 = vsel %vm803, 1, 0
      %v836 = vsel %vm804, 1, 0
      %v837 = vsel %vm805, 1, 0
      %v838 = vsel %vm806, 1, 0
      %v839 = vsel %vm807, 1, 0
      %v840 = vsel %vm808, 1, 0
      %v841 = vsel %vm809, 1, 0
      %v842 = vsel %vm810, 1, 0
      %v843 = vsel %vm811, 1, 0
      %v844 = vsel %vm812, 1, 0
      %v845 = vsel %vm813, 1, 0
      %v846 = vsel %vm814, 1, 0
      %v847 = vsel %vm815, 1, 0
      %v848 = vcvt.s32.f32 %v816
      %v849 = vcvt.s32.f32 %v817
      %v850 = vcvt.s32.f32 %v818
      %v851 = vcvt.s32.f32 %v819
      %v852 = vcvt.s32.f32 %v820
      %v853 = vcvt.s32.f32 %v821
      %v854 = vcvt.s32.f32 %v822
      %v855 = vcvt.s32.f32 %v823
      %v856 = vcvt.s32.f32 %v824
      %v857 = vcvt.s32.f32 %v825
      %v858 = vcvt.s32.f32 %v826
      %v859 = vcvt.s32.f32 %v827
      %v860 = vcvt.s32.f32 %v828
      %v861 = vcvt.s32.f32 %v829
      %v862 = vcvt.s32.f32 %v830
      %v863 = vcvt.s32.f32 %v831
      %v864 = vcvt.s32.f32 %v832
      %v865 = vcvt.s32.f32 %v833
      %v866 = vcvt.s32.f32 %v834
      %v867 = vcvt.s32.f32 %v835
      %v868 = vcvt.s32.f32 %v836
      %v869 = vcvt.s32.f32 %v837
      %v870 = vcvt.s32.f32 %v838
      %v871 = vcvt.s32.f32 %v839
      %v872 = vcvt.s32.f32 %v840
      %v873 = vcvt.s32.f32 %v841
      %v874 = vcvt.s32.f32 %v842
      %v875 = vcvt.s32.f32 %v843
      %v876 = vcvt.s32.f32 %v844
      %v877 = vcvt.s32.f32 %v845
      %v878 = vcvt.s32.f32 %v846
      %v879 = vcvt.s32.f32 %v847
      %v880 = vld [vmem:[#allocation2] sm:$0xff]
      %v881 = vld [vmem:[#allocation2 + $0x8] sm:$0xff]
      %v882 = vld [vmem:[#allocation2 + $0x10] sm:$0xff]
      %v883 = vld [vmem:[#allocation2 + $0x18] sm:$0xff]
      %v884 = vld [vmem:[#allocation2 + $0x20] sm:$0xff]
      %v885 = vld [vmem:[#allocation2 + $0x28] sm:$0xff]
      %v886 = vld [vmem:[#allocation2 + $0x30] sm:$0xff]
      %v887 = vld [vmem:[#allocation2 + $0x38] sm:$0xff]
      %v888 = vld [vmem:[#allocation2 + $0x40] sm:$0xff]
      %v889 = vld [vmem:[#allocation2 + $0x48] sm:$0xff]
      %v890 = vld [vmem:[#allocation2 + $0x50] sm:$0xff]
      %v891 = vld [vmem:[#allocation2 + $0x58] sm:$0xff]
      %v892 = vld [vmem:[#allocation2 + $0x60] sm:$0xff]
      %v893 = vld [vmem:[#allocation2 + $0x68] sm:$0xff]
      %v894 = vld [vmem:[#allocation2 + $0x70] sm:$0xff]
      %v895 = vld [vmem:[#allocation2 + $0x78] sm:$0xff]
      %896 = vmatprep.subr.mxu0 0.0
      %897 = vmatpush1.msra.mxu0 %v723
      %898 = vmatprep.subr.mxu0 0.0
      %899 = vmatpush1.msra.mxu0 %v722
      %900 = vmatprep.subr.mxu0 0.0
      %901 = vmatpush1.msra.mxu0 %v721
      %902 = vmatprep.subr.mxu0 0.0
      %903 = vmatpush1.msra.mxu0 %v720
      %904 = vmatprep.subr.mxu0 0.0
      %905 = vmatpush1.msra.mxu0 %v719
      %906 = vmatprep.subr.mxu0 0.0
      %907 = vmatpush1.msra.mxu0 %v718
      %908 = vmatprep.subr.mxu0 0.0
      %909 = vmatpush1.msra.mxu0 %v717
      %910 = vmatprep.subr.mxu0 0.0
      %911 = vmatpush1.msra.mxu0 %v716
      %912 = vmatprep.subr.mxu0 0.0
      %913 = vmatpush1.msra.mxu0 %v715
      %914 = vmatprep.subr.mxu0 0.0
      %915 = vmatpush1.msra.mxu0 %v714
      %916 = vmatprep.subr.mxu0 0.0
      %917 = vmatpush1.msra.mxu0 %v713
      %918 = vmatprep.subr.mxu0 0.0
      %919 = vmatpush1.msra.mxu0 %v712
      %920 = vmatprep.subr.mxu0 0.0
      %921 = vmatpush1.msra.mxu0 %v711
      %922 = vmatprep.subr.mxu0 0.0
      %923 = vmatpush1.msra.mxu0 %v710
      %924 = vmatprep.subr.mxu0 0.0
      %925 = vmatpush1.msra.mxu0 %v709
      %926 = vmatprep.subr.mxu0 0.0
      %927 = vmatpush1.msra.mxu0 %v708
      %928 = vmatprep.subr.mxu0 0.0
      %929 = vmatpush2.msra.mxu0 %v739
      %930 = vmatprep.subr.mxu0 0.0
      %931 = vmatpush2.msra.mxu0 %v738
      %932 = vmatprep.subr.mxu0 0.0
      %933 = vmatpush2.msra.mxu0 %v737
      %934 = vmatprep.subr.mxu0 0.0
      %935 = vmatpush2.msra.mxu0 %v736
      %936 = vmatprep.subr.mxu0 0.0
      %937 = vmatpush2.msra.mxu0 %v735
      %938 = vmatprep.subr.mxu0 0.0
      %939 = vmatpush2.msra.mxu0 %v734
      %940 = vmatprep.subr.mxu0 0.0
      %941 = vmatpush2.msra.mxu0 %v733
      %942 = vmatprep.subr.mxu0 0.0
      %943 = vmatpush2.msra.mxu0 %v732
      %944 = vmatprep.subr.mxu0 0.0
      %945 = vmatpush2.msra.mxu0 %v731
      %946 = vmatprep.subr.mxu0 0.0
      %947 = vmatpush2.msra.mxu0 %v730
      %948 = vmatprep.subr.mxu0 0.0
      %949 = vmatpush2.msra.mxu0 %v729
      %950 = vmatprep.subr.mxu0 0.0
      %951 = vmatpush2.msra.mxu0 %v728
      %952 = vmatprep.subr.mxu0 0.0
      %953 = vmatpush2.msra.mxu0 %v727
      %954 = vmatprep.subr.mxu0 0.0
      %955 = vmatpush2.msra.mxu0 %v726
      %956 = vmatprep.subr.mxu0 0.0
      %957 = vmatpush2.msra.mxu0 %v725
      %958 = vmatprep.subr.mxu0 0.0
      %959 = vmatpush2.msra.mxu0 %v724
      %960 = vmatprep.mubr.f32.mxu0 %v849
      %961 = vmatmul.mubr.f32.gmra.mxu0 %v848
      %v962 = vpop.f32.mrf.mxu0
      %v963 = vadd.f32 0.0, %v962
      %v964 = vpop.f32.mrf.mxu0
      %965 = vmatprep.mubr.f32.mxu0 %v851
      %966 = vmatmul.mubr.f32.gmra.mxu0 %v850
      %v967 = vpop.f32.mrf.mxu0
      %v968 = vadd.f32 0.0, %v967
      %v969 = vpop.f32.mrf.mxu0
      %970 = vmatprep.mubr.f32.mxu0 %v853
      %971 = vmatmul.mubr.f32.gmra.mxu0 %v852
      %v972 = vpop.f32.mrf.mxu0
      %v973 = vadd.f32 0.0, %v972
      %v974 = vpop.f32.mrf.mxu0
      %975 = vmatprep.mubr.f32.mxu0 %v855
      %976 = vmatmul.mubr.f32.gmra.mxu0 %v854
      %v977 = vpop.f32.mrf.mxu0
      %v978 = vadd.f32 0.0, %v977
      %v979 = vpop.f32.mrf.mxu0
      %980 = vmatprep.mubr.f32.mxu0 %v857
      %981 = vmatmul.mubr.f32.gmra.mxu0 %v856
      %v982 = vpop.f32.mrf.mxu0
      %v983 = vadd.f32 0.0, %v982
      %v984 = vpop.f32.mrf.mxu0
      %985 = vmatprep.mubr.f32.mxu0 %v859
      %986 = vmatmul.mubr.f32.gmra.mxu0 %v858
      %v987 = vpop.f32.mrf.mxu0
      %v988 = vadd.f32 0.0, %v987
      %v989 = vpop.f32.mrf.mxu0
      %990 = vmatprep.mubr.f32.mxu0 %v861
      %991 = vmatmul.mubr.f32.gmra.mxu0 %v860
      %v992 = vpop.f32.mrf.mxu0
      %v993 = vadd.f32 0.0, %v992
      %v994 = vpop.f32.mrf.mxu0
      %995 = vmatprep.mubr.f32.mxu0 %v863
      %996 = vmatmul.mubr.f32.gmra.mxu0 %v862
      %v997 = vpop.f32.mrf.mxu0
      %v998 = vadd.f32 0.0, %v997
      %v999 = vpop.f32.mrf.mxu0
      %1000 = vmatprep.mubr.f32.mxu0 %v865
      %1001 = vmatmul.mubr.f32.gmra.mxu0 %v864
      %v1002 = vpop.f32.mrf.mxu0
      %v1003 = vadd.f32 0.0, %v1002
      %v1004 = vpop.f32.mrf.mxu0
      %1005 = vmatprep.mubr.f32.mxu0 %v867
      %1006 = vmatmul.mubr.f32.gmra.mxu0 %v866
      %v1007 = vpop.f32.mrf.mxu0
      %v1008 = vadd.f32 0.0, %v1007
      %v1009 = vpop.f32.mrf.mxu0
      %1010 = vmatprep.mubr.f32.mxu0 %v869
      %1011 = vmatmul.mubr.f32.gmra.mxu0 %v868
      %v1012 = vpop.f32.mrf.mxu0
      %v1013 = vadd.f32 0.0, %v1012
      %v1014 = vpop.f32.mrf.mxu0
      %1015 = vmatprep.mubr.f32.mxu0 %v871
      %1016 = vmatmul.mubr.f32.gmra.mxu0 %v870
      %v1017 = vpop.f32.mrf.mxu0
      %v1018 = vadd.f32 0.0, %v1017
      %v1019 = vpop.f32.mrf.mxu0
      %1020 = vmatprep.mubr.f32.mxu0 %v873
      %1021 = vmatmul.mubr.f32.gmra.mxu0 %v872
      %v1022 = vpop.f32.mrf.mxu0
      %v1023 = vadd.f32 0.0, %v1022
      %v1024 = vpop.f32.mrf.mxu0
      %1025 = vmatprep.mubr.f32.mxu0 %v875
      %1026 = vmatmul.mubr.f32.gmra.mxu0 %v874
      %v1027 = vpop.f32.mrf.mxu0
      %v1028 = vadd.f32 0.0, %v1027
      %v1029 = vpop.f32.mrf.mxu0
      %1030 = vmatprep.mubr.f32.mxu0 %v877
      %1031 = vmatmul.mubr.f32.gmra.mxu0 %v876
      %v1032 = vpop.f32.mrf.mxu0
      %v1033 = vadd.f32 0.0, %v1032
      %v1034 = vpop.f32.mrf.mxu0
      %1035 = vmatprep.mubr.f32.mxu0 %v879
      %1036 = vmatmul.mubr.f32.gmra.mxu0 %v878
      %v1037 = vpop.f32.mrf.mxu0
      %v1038 = vadd.f32 0.0, %v1037
      %v1039 = vpop.f32.mrf.mxu0
      %1040 = vdwg.mxu0
      %v1041 = vadd.f32 %v880, %v963
      %v1042 = vadd.f32 %v881, %v968
      %v1043 = vadd.f32 %v882, %v973
      %v1044 = vadd.f32 %v883, %v978
      %v1045 = vadd.f32 %v884, %v983
      %v1046 = vadd.f32 %v885, %v988
      %v1047 = vadd.f32 %v886, %v993
      %v1048 = vadd.f32 %v887, %v998
      %v1049 = vadd.f32 %v888, %v1003
      %v1050 = vadd.f32 %v889, %v1008
      %v1051 = vadd.f32 %v890, %v1013
      %v1052 = vadd.f32 %v891, %v1018
      %v1053 = vadd.f32 %v892, %v1023
      %v1054 = vadd.f32 %v893, %v1028
      %v1055 = vadd.f32 %v894, %v1033
      %v1056 = vadd.f32 %v895, %v1038
      %vm1057 = vcmask 130048
      %1058 = vst.msk [vmem:[#allocation2] sm:$0xff] %vm1057, %v1041
      %1059 = vst.msk [vmem:[#allocation2 + $0x8] sm:$0xff] %vm1057, %v1042
      %1060 = vst.msk [vmem:[#allocation2 + $0x10] sm:$0xff] %vm1057, %v1043
      %1061 = vst.msk [vmem:[#allocation2 + $0x18] sm:$0xff] %vm1057, %v1044
      %1062 = vst.msk [vmem:[#allocation2 + $0x20] sm:$0xff] %vm1057, %v1045
      %1063 = vst.msk [vmem:[#allocation2 + $0x28] sm:$0xff] %vm1057, %v1046
      %1064 = vst.msk [vmem:[#allocation2 + $0x30] sm:$0xff] %vm1057, %v1047
      %1065 = vst.msk [vmem:[#allocation2 + $0x38] sm:$0xff] %vm1057, %v1048
      %1066 = vst.msk [vmem:[#allocation2 + $0x40] sm:$0xff] %vm1057, %v1049
      %1067 = vst.msk [vmem:[#allocation2 + $0x48] sm:$0xff] %vm1057, %v1050
      %1068 = vst.msk [vmem:[#allocation2 + $0x50] sm:$0xff] %vm1057, %v1051
      %1069 = vst.msk [vmem:[#allocation2 + $0x58] sm:$0xff] %vm1057, %v1052
      %1070 = vst.msk [vmem:[#allocation2 + $0x60] sm:$0xff] %vm1057, %v1053
      %1071 = vst.msk [vmem:[#allocation2 + $0x68] sm:$0xff] %vm1057, %v1054
      %1072 = vst.msk [vmem:[#allocation2 + $0x70] sm:$0xff] %vm1057, %v1055
      %1073 = vst.msk [vmem:[#allocation2 + $0x78] sm:$0xff] %vm1057, %v1056
    $region49: #{tpu_custom_call.1} parent=1 // pred_fallthru
      _
    // Predicated region
    $region50: #{tpu_custom_call.1} parent=1 // pred_check
      %p1074 = pneg %p221
    $region51: #{tpu_custom_call.1} parent=1 // pred_check_branch
      %1076 = sbr.rel (%p1074) target = $region53
    $region52: #{tpu_custom_call.1} parent=1 // pred_region
      %v1077 = vld [vmem:[%s2] sm:$0xff]
      %v1078 = vld [vmem:[%s2 + $0x8] sm:$0xff]
      %v1079 = vld [vmem:[%s2 + $0x10] sm:$0xff]
      %v1080 = vld [vmem:[%s2 + $0x18] sm:$0xff]
      %v1081 = vld [vmem:[%s2 + $0x20] sm:$0xff]
      %v1082 = vld [vmem:[%s2 + $0x28] sm:$0xff]
      %v1083 = vld [vmem:[%s2 + $0x30] sm:$0xff]
      %v1084 = vld [vmem:[%s2 + $0x38] sm:$0xff]
      %v1085 = vld [vmem:[%s2 + $0x40] sm:$0xff]
      %v1086 = vld [vmem:[%s2 + $0x48] sm:$0xff]
      %v1087 = vld [vmem:[%s2 + $0x50] sm:$0xff]
      %v1088 = vld [vmem:[%s2 + $0x58] sm:$0xff]
      %v1089 = vld [vmem:[%s2 + $0x60] sm:$0xff]
      %v1090 = vld [vmem:[%s2 + $0x68] sm:$0xff]
      %v1091 = vld [vmem:[%s2 + $0x70] sm:$0xff]
      %v1092 = vld [vmem:[%s2 + $0x78] sm:$0xff]
      %v1093 = vld [vmem:[#allocation2] sm:$0xff]
      %v1094 = vld [vmem:[#allocation2 + $0x8] sm:$0xff]
      %v1095 = vld [vmem:[#allocation2 + $0x10] sm:$0xff]
      %v1096 = vld [vmem:[#allocation2 + $0x18] sm:$0xff]
      %v1097 = vld [vmem:[#allocation2 + $0x20] sm:$0xff]
      %v1098 = vld [vmem:[#allocation2 + $0x28] sm:$0xff]
      %v1099 = vld [vmem:[#allocation2 + $0x30] sm:$0xff]
      %v1100 = vld [vmem:[#allocation2 + $0x38] sm:$0xff]
      %v1101 = vld [vmem:[#allocation2 + $0x40] sm:$0xff]
      %v1102 = vld [vmem:[#allocation2 + $0x48] sm:$0xff]
      %v1103 = vld [vmem:[#allocation2 + $0x50] sm:$0xff]
      %v1104 = vld [vmem:[#allocation2 + $0x58] sm:$0xff]
      %v1105 = vld [vmem:[#allocation2 + $0x60] sm:$0xff]
      %v1106 = vld [vmem:[#allocation2 + $0x68] sm:$0xff]
      %v1107 = vld [vmem:[#allocation2 + $0x70] sm:$0xff]
      %v1108 = vld [vmem:[#allocation2 + $0x78] sm:$0xff]
      %v1109 = vadd.f32 %v1077, %v1093
      %v1110 = vadd.f32 %v1078, %v1094
      %v1111 = vadd.f32 %v1079, %v1095
      %v1112 = vadd.f32 %v1080, %v1096
      %v1113 = vadd.f32 %v1081, %v1097
      %v1114 = vadd.f32 %v1082, %v1098
      %v1115 = vadd.f32 %v1083, %v1099
      %v1116 = vadd.f32 %v1084, %v1100
      %v1117 = vadd.f32 %v1085, %v1101
      %v1118 = vadd.f32 %v1086, %v1102
      %v1119 = vadd.f32 %v1087, %v1103
      %v1120 = vadd.f32 %v1088, %v1104
      %v1121 = vadd.f32 %v1089, %v1105
      %v1122 = vadd.f32 %v1090, %v1106
      %v1123 = vadd.f32 %v1091, %v1107
      %v1124 = vadd.f32 %v1092, %v1108
      %v1125 = vld [vmem:[%s8] sm:$0xff]
      %v1126 = vld [vmem:[%s8 + $0x8] sm:$0xff]
      %v1127 = vld [vmem:[%s9] sm:$0x1]
      %v1129 = vlaneseq
      %v1130 = vshrl.u32 %v1129, 7
      %v1131 = vsub.s32 0, %v1130
      %v1132 = vrot.slane %v1127, %v1131
      %vm1134 = vcmask 130048
      %v1136 = vsel %vm1134, %v1109, 0
      %v1139 = vsel %vm1134, %v1110, 0
      %v1142 = vsel %vm1134, %v1111, 0
      %v1145 = vsel %vm1134, %v1112, 0
      %v1148 = vsel %vm1134, %v1113, 0
      %v1151 = vsel %vm1134, %v1114, 0
      %v1154 = vsel %vm1134, %v1115, 0
      %v1157 = vsel %vm1134, %v1116, 0
      %v1160 = vsel %vm1134, %v1117, 0
      %v1163 = vsel %vm1134, %v1118, 0
      %v1166 = vsel %vm1134, %v1119, 0
      %v1169 = vsel %vm1134, %v1120, 0
      %v1172 = vsel %vm1134, %v1121, 0
      %v1175 = vsel %vm1134, %v1122, 0
      %v1178 = vsel %vm1134, %v1123, 0
      %v1181 = vsel %vm1134, %v1124, 0
      %1183 = vmatprep.subr.mxu0 0.0
      %1184 = vmatpush1.msra.mxu0 0.0
      %1185 = vmatprep.subr.mxu0 0.0
      %1186 = vmatpush1.msra.mxu0 0.0
      %1187 = vmatprep.subr.mxu0 0.0
      %1188 = vmatpush1.msra.mxu0 0.0
      %1189 = vmatprep.subr.mxu0 0.0
      %1190 = vmatpush1.msra.mxu0 0.0
      %1191 = vmatprep.subr.mxu0 0.0
      %1192 = vmatpush1.msra.mxu0 0.0
      %1193 = vmatprep.subr.mxu0 0.0
      %1194 = vmatpush1.msra.mxu0 0.0
      %1195 = vmatprep.subr.mxu0 0.0
      %1196 = vmatpush1.msra.mxu0 0.0
      %1197 = vmatprep.subr.mxu0 0.0
      %1198 = vmatpush1.msra.mxu0 0.0
      %1199 = vmatprep.subr.mxu0 0.0
      %1200 = vmatpush1.msra.mxu0 0.0
      %1201 = vmatprep.subr.mxu0 0.0
      %1202 = vmatpush1.msra.mxu0 0.0
      %1203 = vmatprep.subr.mxu0 0.0
      %1204 = vmatpush1.msra.mxu0 0.0
      %1205 = vmatprep.subr.mxu0 0.0
      %1206 = vmatpush1.msra.mxu0 0.0
      %1207 = vmatprep.subr.mxu0 0.0
      %1208 = vmatpush1.msra.mxu0 0.0
      %1209 = vmatprep.subr.mxu0 0.0
      %1210 = vmatpush1.msra.mxu0 0.0
      %1211 = vmatprep.subr.mxu0 0.0
      %1212 = vmatpush1.msra.mxu0 %v1126
      %1213 = vmatprep.subr.mxu0 0.0
      %1214 = vmatpush1.msra.mxu0 %v1125
      %1215 = vmatprep.subr.mxu0 0.0
      %1216 = vmatpush2.msra.mxu0 0.0
      %1217 = vmatprep.subr.mxu0 0.0
      %1218 = vmatpush2.msra.mxu0 0.0
      %1219 = vmatprep.subr.mxu0 0.0
      %1220 = vmatpush2.msra.mxu0 0.0
      %1221 = vmatprep.subr.mxu0 0.0
      %1222 = vmatpush2.msra.mxu0 0.0
      %1223 = vmatprep.subr.mxu0 0.0
      %1224 = vmatpush2.msra.mxu0 0.0
      %1225 = vmatprep.subr.mxu0 0.0
      %1226 = vmatpush2.msra.mxu0 0.0
      %1227 = vmatprep.subr.mxu0 0.0
      %1228 = vmatpush2.msra.mxu0 0.0
      %1229 = vmatprep.subr.mxu0 0.0
      %1230 = vmatpush2.msra.mxu0 0.0
      %1231 = vmatprep.subr.mxu0 0.0
      %1232 = vmatpush2.msra.mxu0 0.0
      %1233 = vmatprep.subr.mxu0 0.0
      %1234 = vmatpush2.msra.mxu0 0.0
      %1235 = vmatprep.subr.mxu0 0.0
      %1236 = vmatpush2.msra.mxu0 0.0
      %1237 = vmatprep.subr.mxu0 0.0
      %1238 = vmatpush2.msra.mxu0 0.0
      %1239 = vmatprep.subr.mxu0 0.0
      %1240 = vmatpush2.msra.mxu0 0.0
      %1241 = vmatprep.subr.mxu0 0.0
      %1242 = vmatpush2.msra.mxu0 0.0
      %1243 = vmatprep.subr.mxu0 0.0
      %1244 = vmatpush2.msra.mxu0 0.0
      %1245 = vmatprep.subr.mxu0 0.0
      %1246 = vmatpush2.msra.mxu0 0.0
      %1247 = vmatprep.mubr.f32.mxu0 0.0
      %1248 = vmatmul.mubr.f32.gmra.mxu0 %v1136
      %v1249 = vpop.f32.mrf.mxu0
      %v1250 = vadd.f32 %v1132, %v1249
      %v1251 = vpop.f32.mrf.mxu0
      %1252 = vmatprep.mubr.f32.mxu0 0.0
      %1253 = vmatmul.mubr.f32.gmra.mxu0 %v1139
      %v1254 = vpop.f32.mrf.mxu0
      %v1255 = vadd.f32 %v1132, %v1254
      %v1256 = vpop.f32.mrf.mxu0
      %1257 = vmatprep.mubr.f32.mxu0 0.0
      %1258 = vmatmul.mubr.f32.gmra.mxu0 %v1142
      %v1259 = vpop.f32.mrf.mxu0
      %v1260 = vadd.f32 %v1132, %v1259
      %v1261 = vpop.f32.mrf.mxu0
      %1262 = vmatprep.mubr.f32.mxu0 0.0
      %1263 = vmatmul.mubr.f32.gmra.mxu0 %v1145
      %v1264 = vpop.f32.mrf.mxu0
      %v1265 = vadd.f32 %v1132, %v1264
      %v1266 = vpop.f32.mrf.mxu0
      %1267 = vmatprep.mubr.f32.mxu0 0.0
      %1268 = vmatmul.mubr.f32.gmra.mxu0 %v1148
      %v1269 = vpop.f32.mrf.mxu0
      %v1270 = vadd.f32 %v1132, %v1269
      %v1271 = vpop.f32.mrf.mxu0
      %1272 = vmatprep.mubr.f32.mxu0 0.0
      %1273 = vmatmul.mubr.f32.gmra.mxu0 %v1151
      %v1274 = vpop.f32.mrf.mxu0
      %v1275 = vadd.f32 %v1132, %v1274
      %v1276 = vpop.f32.mrf.mxu0
      %1277 = vmatprep.mubr.f32.mxu0 0.0
      %1278 = vmatmul.mubr.f32.gmra.mxu0 %v1154
      %v1279 = vpop.f32.mrf.mxu0
      %v1280 = vadd.f32 %v1132, %v1279
      %v1281 = vpop.f32.mrf.mxu0
      %1282 = vmatprep.mubr.f32.mxu0 0.0
      %1283 = vmatmul.mubr.f32.gmra.mxu0 %v1157
      %v1284 = vpop.f32.mrf.mxu0
      %v1285 = vadd.f32 %v1132, %v1284
      %v1286 = vpop.f32.mrf.mxu0
      %1287 = vmatprep.mubr.f32.mxu0 0.0
      %1288 = vmatmul.mubr.f32.gmra.mxu0 %v1160
      %v1289 = vpop.f32.mrf.mxu0
      %v1290 = vadd.f32 %v1132, %v1289
      %v1291 = vpop.f32.mrf.mxu0
      %1292 = vmatprep.mubr.f32.mxu0 0.0
      %1293 = vmatmul.mubr.f32.gmra.mxu0 %v1163
      %v1294 = vpop.f32.mrf.mxu0
      %v1295 = vadd.f32 %v1132, %v1294
      %v1296 = vpop.f32.mrf.mxu0
      %1297 = vmatprep.mubr.f32.mxu0 0.0
      %1298 = vmatmul.mubr.f32.gmra.mxu0 %v1166
      %v1299 = vpop.f32.mrf.mxu0
      %v1300 = vadd.f32 %v1132, %v1299
      %v1301 = vpop.f32.mrf.mxu0
      %1302 = vmatprep.mubr.f32.mxu0 0.0
      %1303 = vmatmul.mubr.f32.gmra.mxu0 %v1169
      %v1304 = vpop.f32.mrf.mxu0
      %v1305 = vadd.f32 %v1132, %v1304
      %v1306 = vpop.f32.mrf.mxu0
      %1307 = vmatprep.mubr.f32.mxu0 0.0
      %1308 = vmatmul.mubr.f32.gmra.mxu0 %v1172
      %v1309 = vpop.f32.mrf.mxu0
      %v1310 = vadd.f32 %v1132, %v1309
      %v1311 = vpop.f32.mrf.mxu0
      %1312 = vmatprep.mubr.f32.mxu0 0.0
      %1313 = vmatmul.mubr.f32.gmra.mxu0 %v1175
      %v1314 = vpop.f32.mrf.mxu0
      %v1315 = vadd.f32 %v1132, %v1314
      %v1316 = vpop.f32.mrf.mxu0
      %1317 = vmatprep.mubr.f32.mxu0 0.0
      %1318 = vmatmul.mubr.f32.gmra.mxu0 %v1178
      %v1319 = vpop.f32.mrf.mxu0
      %v1320 = vadd.f32 %v1132, %v1319
      %v1321 = vpop.f32.mrf.mxu0
      %1322 = vmatprep.mubr.f32.mxu0 0.0
      %1323 = vmatmul.mubr.f32.gmra.mxu0 %v1181
      %v1324 = vpop.f32.mrf.mxu0
      %v1325 = vadd.f32 %v1132, %v1324
      %v1326 = vpop.f32.mrf.mxu0
      %1327 = vdwg.mxu0
      %v1328 = vmax.f32 %v1250, 0.0
      %v1329 = vmax.f32 %v1255, 0.0
      %v1330 = vmax.f32 %v1260, 0.0
      %v1331 = vmax.f32 %v1265, 0.0
      %v1332 = vmax.f32 %v1270, 0.0
      %v1333 = vmax.f32 %v1275, 0.0
      %v1334 = vmax.f32 %v1280, 0.0
      %v1335 = vmax.f32 %v1285, 0.0
      %v1336 = vmax.f32 %v1290, 0.0
      %v1337 = vmax.f32 %v1295, 0.0
      %v1338 = vmax.f32 %v1300, 0.0
      %v1339 = vmax.f32 %v1305, 0.0
      %v1340 = vmax.f32 %v1310, 0.0
      %v1341 = vmax.f32 %v1315, 0.0
      %v1342 = vmax.f32 %v1320, 0.0
      %v1343 = vmax.f32 %v1325, 0.0
      %v1344 = vld [vmem:[%s10] sm:$0xff]
      %v1345 = vld [vmem:[%s10 + $0x8] sm:$0xff]
      %v1346 = vld [vmem:[%s10 + $0x10] sm:$0xff]
      %v1347 = vld [vmem:[%s10 + $0x18] sm:$0xff]
      %v1348 = vld [vmem:[%s10 + $0x20] sm:$0xff]
      %v1349 = vld [vmem:[%s10 + $0x28] sm:$0xff]
      %v1350 = vld [vmem:[%s10 + $0x30] sm:$0xff]
      %v1351 = vld [vmem:[%s10 + $0x38] sm:$0xff]
      %v1352 = vld [vmem:[%s10 + $0x40] sm:$0xff]
      %v1353 = vld [vmem:[%s10 + $0x48] sm:$0xff]
      %v1354 = vld [vmem:[%s10 + $0x50] sm:$0xff]
      %v1355 = vld [vmem:[%s10 + $0x58] sm:$0xff]
      %v1356 = vld [vmem:[%s10 + $0x60] sm:$0xff]
      %v1357 = vld [vmem:[%s10 + $0x68] sm:$0xff]
      %v1358 = vld [vmem:[%s10 + $0x70] sm:$0xff]
      %v1359 = vld [vmem:[%s10 + $0x78] sm:$0xff]
      %v1360 = vld [vmem:[%s11] sm:$0x1]
      %v1362 = vlaneseq
      %v1363 = vshrl.u32 %v1362, 7
      %v1364 = vsub.s32 0, %v1363
      %v1365 = vrot.slane %v1360, %v1364
      %1367 = vmatprep.subr.mxu0 0.0
      %1368 = vmatpush1.msra.mxu0 %v1359
      %1369 = vmatprep.subr.mxu0 0.0
      %1370 = vmatpush1.msra.mxu0 %v1358
      %1371 = vmatprep.subr.mxu0 0.0
      %1372 = vmatpush1.msra.mxu0 %v1357
      %1373 = vmatprep.subr.mxu0 0.0
      %1374 = vmatpush1.msra.mxu0 %v1356
      %1375 = vmatprep.subr.mxu0 0.0
      %1376 = vmatpush1.msra.mxu0 %v1355
      %1377 = vmatprep.subr.mxu0 0.0
      %1378 = vmatpush1.msra.mxu0 %v1354
      %1379 = vmatprep.subr.mxu0 0.0
      %1380 = vmatpush1.msra.mxu0 %v1353
      %1381 = vmatprep.subr.mxu0 0.0
      %1382 = vmatpush1.msra.mxu0 %v1352
      %1383 = vmatprep.subr.mxu0 0.0
      %1384 = vmatpush1.msra.mxu0 %v1351
      %1385 = vmatprep.subr.mxu0 0.0
      %1386 = vmatpush1.msra.mxu0 %v1350
      %1387 = vmatprep.subr.mxu0 0.0
      %1388 = vmatpush1.msra.mxu0 %v1349
      %1389 = vmatprep.subr.mxu0 0.0
      %1390 = vmatpush1.msra.mxu0 %v1348
      %1391 = vmatprep.subr.mxu0 0.0
      %1392 = vmatpush1.msra.mxu0 %v1347
      %1393 = vmatprep.subr.mxu0 0.0
      %1394 = vmatpush1.msra.mxu0 %v1346
      %1395 = vmatprep.subr.mxu0 0.0
      %1396 = vmatpush1.msra.mxu0 %v1345
      %1397 = vmatprep.subr.mxu0 0.0
      %1398 = vmatpush1.msra.mxu0 %v1344
      %1399 = vmatprep.subr.mxu0 0.0
      %1400 = vmatpush2.msra.mxu0 0.0
      %1401 = vmatprep.subr.mxu0 0.0
      %1402 = vmatpush2.msra.mxu0 0.0
      %1403 = vmatprep.subr.mxu0 0.0
      %1404 = vmatpush2.msra.mxu0 0.0
      %1405 = vmatprep.subr.mxu0 0.0
      %1406 = vmatpush2.msra.mxu0 0.0
      %1407 = vmatprep.subr.mxu0 0.0
      %1408 = vmatpush2.msra.mxu0 0.0
      %1409 = vmatprep.subr.mxu0 0.0
      %1410 = vmatpush2.msra.mxu0 0.0
      %1411 = vmatprep.subr.mxu0 0.0
      %1412 = vmatpush2.msra.mxu0 0.0
      %1413 = vmatprep.subr.mxu0 0.0
      %1414 = vmatpush2.msra.mxu0 0.0
      %1415 = vmatprep.subr.mxu0 0.0
      %1416 = vmatpush2.msra.mxu0 0.0
      %1417 = vmatprep.subr.mxu0 0.0
      %1418 = vmatpush2.msra.mxu0 0.0
      %1419 = vmatprep.subr.mxu0 0.0
      %1420 = vmatpush2.msra.mxu0 0.0
      %1421 = vmatprep.subr.mxu0 0.0
      %1422 = vmatpush2.msra.mxu0 0.0
      %1423 = vmatprep.subr.mxu0 0.0
      %1424 = vmatpush2.msra.mxu0 0.0
      %1425 = vmatprep.subr.mxu0 0.0
      %1426 = vmatpush2.msra.mxu0 0.0
      %1427 = vmatprep.subr.mxu0 0.0
      %1428 = vmatpush2.msra.mxu0 0.0
      %1429 = vmatprep.subr.mxu0 0.0
      %1430 = vmatpush2.msra.mxu0 0.0
      %1431 = vmatprep.mubr.f32.mxu0 0.0
      %1432 = vmatmul.mubr.f32.gmra.mxu0 %v1328
      %v1433 = vpop.f32.mrf.mxu0
      %v1434 = vadd.f32 %v1365, %v1433
      %v1435 = vpop.f32.mrf.mxu0
      %1436 = vmatprep.mubr.f32.mxu0 0.0
      %1437 = vmatmul.mubr.f32.gmra.mxu0 %v1329
      %v1438 = vpop.f32.mrf.mxu0
      %v1439 = vadd.f32 %v1365, %v1438
      %v1440 = vpop.f32.mrf.mxu0
      %1441 = vmatprep.mubr.f32.mxu0 0.0
      %1442 = vmatmul.mubr.f32.gmra.mxu0 %v1330
      %v1443 = vpop.f32.mrf.mxu0
      %v1444 = vadd.f32 %v1365, %v1443
      %v1445 = vpop.f32.mrf.mxu0
      %1446 = vmatprep.mubr.f32.mxu0 0.0
      %1447 = vmatmul.mubr.f32.gmra.mxu0 %v1331
      %v1448 = vpop.f32.mrf.mxu0
      %v1449 = vadd.f32 %v1365, %v1448
      %v1450 = vpop.f32.mrf.mxu0
      %1451 = vmatprep.mubr.f32.mxu0 0.0
      %1452 = vmatmul.mubr.f32.gmra.mxu0 %v1332
      %v1453 = vpop.f32.mrf.mxu0
      %v1454 = vadd.f32 %v1365, %v1453
      %v1455 = vpop.f32.mrf.mxu0
      %1456 = vmatprep.mubr.f32.mxu0 0.0
      %1457 = vmatmul.mubr.f32.gmra.mxu0 %v1333
      %v1458 = vpop.f32.mrf.mxu0
      %v1459 = vadd.f32 %v1365, %v1458
      %v1460 = vpop.f32.mrf.mxu0
      %1461 = vmatprep.mubr.f32.mxu0 0.0
      %1462 = vmatmul.mubr.f32.gmra.mxu0 %v1334
      %v1463 = vpop.f32.mrf.mxu0
      %v1464 = vadd.f32 %v1365, %v1463
      %v1465 = vpop.f32.mrf.mxu0
      %1466 = vmatprep.mubr.f32.mxu0 0.0
      %1467 = vmatmul.mubr.f32.gmra.mxu0 %v1335
      %v1468 = vpop.f32.mrf.mxu0
      %v1469 = vadd.f32 %v1365, %v1468
      %v1470 = vpop.f32.mrf.mxu0
      %1471 = vmatprep.mubr.f32.mxu0 0.0
      %1472 = vmatmul.mubr.f32.gmra.mxu0 %v1336
      %v1473 = vpop.f32.mrf.mxu0
      %v1474 = vadd.f32 %v1365, %v1473
      %v1475 = vpop.f32.mrf.mxu0
      %1476 = vmatprep.mubr.f32.mxu0 0.0
      %1477 = vmatmul.mubr.f32.gmra.mxu0 %v1337
      %v1478 = vpop.f32.mrf.mxu0
      %v1479 = vadd.f32 %v1365, %v1478
      %v1480 = vpop.f32.mrf.mxu0
      %1481 = vmatprep.mubr.f32.mxu0 0.0
      %1482 = vmatmul.mubr.f32.gmra.mxu0 %v1338
      %v1483 = vpop.f32.mrf.mxu0
      %v1484 = vadd.f32 %v1365, %v1483
      %v1485 = vpop.f32.mrf.mxu0
      %1486 = vmatprep.mubr.f32.mxu0 0.0
      %1487 = vmatmul.mubr.f32.gmra.mxu0 %v1339
      %v1488 = vpop.f32.mrf.mxu0
      %v1489 = vadd.f32 %v1365, %v1488
      %v1490 = vpop.f32.mrf.mxu0
      %1491 = vmatprep.mubr.f32.mxu0 0.0
      %1492 = vmatmul.mubr.f32.gmra.mxu0 %v1340
      %v1493 = vpop.f32.mrf.mxu0
      %v1494 = vadd.f32 %v1365, %v1493
      %v1495 = vpop.f32.mrf.mxu0
      %1496 = vmatprep.mubr.f32.mxu0 0.0
      %1497 = vmatmul.mubr.f32.gmra.mxu0 %v1341
      %v1498 = vpop.f32.mrf.mxu0
      %v1499 = vadd.f32 %v1365, %v1498
      %v1500 = vpop.f32.mrf.mxu0
      %1501 = vmatprep.mubr.f32.mxu0 0.0
      %1502 = vmatmul.mubr.f32.gmra.mxu0 %v1342
      %v1503 = vpop.f32.mrf.mxu0
      %v1504 = vadd.f32 %v1365, %v1503
      %v1505 = vpop.f32.mrf.mxu0
      %1506 = vmatprep.mubr.f32.mxu0 0.0
      %1507 = vmatmul.mubr.f32.gmra.mxu0 %v1343
      %v1508 = vpop.f32.mrf.mxu0
      %v1509 = vadd.f32 %v1365, %v1508
      %v1510 = vpop.f32.mrf.mxu0
      %1511 = vdwg.mxu0
      %1512 = vst [vmem:[#allocation6] sm:$0xff] %v1434
      %1513 = vst [vmem:[#allocation6 + $0x8] sm:$0xff] %v1439
      %1514 = vst [vmem:[#allocation6 + $0x10] sm:$0xff] %v1444
      %1515 = vst [vmem:[#allocation6 + $0x18] sm:$0xff] %v1449
      %1516 = vst [vmem:[#allocation6 + $0x20] sm:$0xff] %v1454
      %1517 = vst [vmem:[#allocation6 + $0x28] sm:$0xff] %v1459
      %1518 = vst [vmem:[#allocation6 + $0x30] sm:$0xff] %v1464
      %1519 = vst [vmem:[#allocation6 + $0x38] sm:$0xff] %v1469
      %1520 = vst [vmem:[#allocation6 + $0x40] sm:$0xff] %v1474
      %1521 = vst [vmem:[#allocation6 + $0x48] sm:$0xff] %v1479
      %1522 = vst [vmem:[#allocation6 + $0x50] sm:$0xff] %v1484
      %1523 = vst [vmem:[#allocation6 + $0x58] sm:$0xff] %v1489
      %1524 = vst [vmem:[#allocation6 + $0x60] sm:$0xff] %v1494
      %1525 = vst [vmem:[#allocation6 + $0x68] sm:$0xff] %v1499
      %1526 = vst [vmem:[#allocation6 + $0x70] sm:$0xff] %v1504
      %1527 = vst [vmem:[#allocation6 + $0x78] sm:$0xff] %v1509
    $region53: #{tpu_custom_call.1} parent=1 // pred_fallthru
      _
    // Predicated region
    $region54: #{tpu_custom_call.1} parent=1 // pred_check
      _
    $region55: #{tpu_custom_call.1} parent=1 // pred_check_branch
      %1529 = sbr.rel (0) target = $region57
    $region56: #{tpu_custom_call.1} parent=1 // pred_region
      %s1531 = ssub.s32 2048, 2048
      %1532 = vsyncadd [#allocation7], %s1531
      %s1533 = sshll.u32 [#allocation6], 4
      %s1534 = int_to_ptr.vmem [resolvable:$true] %s1533
      %1539 = dma.vmem_to_hbm [thread:$0]  %s1534, 2048, %s12, [#allocation7], 128, 128, 8
    $region57: #{tpu_custom_call.1} parent=1 // pred_fallthru
      _
    // Predicated region
    $region58: #{tpu_custom_call.1} parent=1 // pred_check
      _
    $region59: #{tpu_custom_call.1} parent=1 // pred_check_branch
      %1541 = sbr.rel (0) target = $region61
    $region60: #{tpu_custom_call.1} parent=1 // pred_region
      %1542 = dma.done [#allocation7], 2048
    $region61: #{tpu_custom_call.1} parent=1 // pred_fallthru
      _
    %1543 = vsyncpa [#allocation7], 1

</llo_original>
